<compile_context>
chip_gen: v7x
topology: tpu7x:2x2x1
jax: 0.10.0
libtpu: 0.0.40
codegen_flags: <defaults>
</compile_context>

<pallas_src>
import jax
import jax.numpy as jnp
from jax.experimental import pallas as pl
from jax.experimental.pallas import tpu as pltpu

N_INPUT = 29
N_HIDDEN = 16
N_OUTPUT = 1

# Default batch rows per grid step.  With the 29->128 lane padding this costs
#   x:   2 (double buffer) * TILE_B * 512 B  = 8 MiB
#   out: 2 * TILE_B * 512 B                  = 8 MiB
#   h intermediate (TILE_B, 16) f32 padded   ~ 4-8 MiB
# which stays comfortably under the explicit 48 MiB scoped-VMEM limit on every
# generation (v5e/v6e: 128 MiB physical, v7x: 64 MiB physical).
TILE_B = 8192
VMEM_LIMIT_BYTES = 48 * 1024 * 1024


def _round_up(n, m):
    return ((n + m - 1) // m) * m


def _mlp_kernel(x_ref, w1t_ref, b1_ref, w2_ref, b2_ref, o_ref):
    # x_ref:  (TILE_B, 29)   batch on sublanes, features on lanes (natural layout)
    # w1t_ref:(29, 16)       W1^T, VMEM-resident (constant index_map)
    # b1_ref: (1, 16)        w2_ref: (1, 16)       b2_ref: (1, 1)
    # o_ref:  (TILE_B, 1)
    # Layer 1 on the MXU, f32 accumulate (x may be f32 or bf16).
    h = jnp.dot(x_ref[...], w1t_ref[...], preferred_element_type=jnp.float32)
    h = jnp.maximum(h + b1_ref[...], 0.0)                    # bias + ReLU (VPU, f32)
    # Layer 2 (16 -> 1): broadcast-multiply + 16-wide lane reduce (VPU/XLU, no MXU).
    y = jnp.sum(h * w2_ref[...], axis=1, keepdims=True) + b2_ref[...]
    o_ref[...] = y.astype(o_ref.dtype)


def net_forward(x, w1, b1, w2, b2, *, tile_b=TILE_B,
                vmem_limit_bytes=VMEM_LIMIT_BYTES):
    """Forward pass of Net.

    x:  (B, 29)  float32 or bfloat16 (bf16 halves the dominant HBM read traffic)
    w1: (16, 29), b1: (16,)   -- nn.Linear layer1 layout (out, in)
    w2: (1, 16),  b2: (1,)    -- nn.Linear layer2 layout (out, in)
    returns (B, 1) float32
    """
    B = x.shape[0]
    assert x.shape[1] == N_INPUT

    # Shrink the tile for small batches (block sublane dim stays a multiple of 8).
    tile_b = min(tile_b, _round_up(B, 8))
    assert tile_b % 8 == 0
    num_tiles = pl.cdiv(B, tile_b)

    # Tiny weight-side prep (a few KB at most; not the big x array).
    w1t = w1.T.astype(x.dtype)                       # (29, 16)
    b1_row = b1.reshape(1, N_HIDDEN).astype(jnp.float32)
    w2_row = w2.reshape(1, N_HIDDEN).astype(jnp.float32)
    b2_2d = b2.reshape(1, 1).astype(jnp.float32)

    x_bytes = B * N_INPUT * jnp.dtype(x.dtype).itemsize
    w_bytes = (N_HIDDEN * N_INPUT + 2 * N_HIDDEN + 1) * 4
    cost = pl.CostEstimate(
        flops=2 * B * N_INPUT * N_HIDDEN + 2 * B * N_HIDDEN,
        transcendentals=0,
        bytes_accessed=x_bytes + B * N_OUTPUT * 4 + w_bytes,
    )

    out = pl.pallas_call(
        _mlp_kernel,
        out_shape=jax.ShapeDtypeStruct((B, N_OUTPUT), jnp.float32),
        grid=(num_tiles,),
        in_specs=[
            # Batch-tiled natural-layout input (contiguous HBM read, double-buffered).
            pl.BlockSpec((tile_b, N_INPUT), lambda i: (i, 0)),
            # Weights/biases: constant block -> fetched once, stay VMEM-resident.
            pl.BlockSpec((N_INPUT, N_HIDDEN), lambda i: (0, 0)),
            pl.BlockSpec((1, N_HIDDEN), lambda i: (0, 0)),
            pl.BlockSpec((1, N_HIDDEN), lambda i: (0, 0)),
            pl.BlockSpec((1, 1), lambda i: (0, 0)),
        ],
        out_specs=pl.BlockSpec((tile_b, N_OUTPUT), lambda i: (i, 0)),
        compiler_params=pltpu.CompilerParams(
            dimension_semantics=("parallel",),       # shard batch tiles across TCs
            vmem_limit_bytes=vmem_limit_bytes,       # explicit budget (lane padding)
        ),
        cost_estimate=cost,
    )(x, w1t, b1_row, w2_row, b2_2d)

    return out


def init_params(key):
    """nn.Linear-style init: uniform(-1/sqrt(fan_in), 1/sqrt(fan_in)), (out, in) layout."""
    k1, k2, k3, k4 = jax.random.split(key, 4)
    bound1 = 1.0 / jnp.sqrt(jnp.float32(N_INPUT))
    bound2 = 1.0 / jnp.sqrt(jnp.float32(N_HIDDEN))
    w1 = jax.random.uniform(k1, (N_HIDDEN, N_INPUT), jnp.float32, -bound1, bound1)
    b1 = jax.random.uniform(k2, (N_HIDDEN,), jnp.float32, -bound1, bound1)
    w2 = jax.random.uniform(k3, (N_OUTPUT, N_HIDDEN), jnp.float32, -bound2, bound2)
    b2 = jax.random.uniform(k4, (N_OUTPUT,), jnp.float32, -bound2, bound2)
    return w1, b1, w2, b2


if __name__ == "__main__":
    key = jax.random.PRNGKey(0)
    k_x, k_p = jax.random.split(key)

    B = 1000  # small batch: exercises the partial (clipped) last block
    x = jax.random.normal(k_x, (B, N_INPUT), dtype=jnp.float32)
    w1, b1, w2, b2 = init_params(k_p)

    # Pure-JAX reference (identical semantics to the PyTorch forward).
    ref = jnp.maximum(x @ w1.T + b1, 0.0) @ w2.T + b2

    # 1) f32 path, default (single-tile) grid.
    out = jax.block_until_ready(net_forward(x, w1, b1, w2, b2))
    assert out.shape == (B, N_OUTPUT)
    assert jnp.allclose(out, ref, atol=1e-4, rtol=1e-4)

    # 2) f32 path, multi-tile grid (4 tiles incl. a ragged partial tail).
    out_mt = jax.block_until_ready(net_forward(x, w1, b1, w2, b2, tile_b=256))
    assert jnp.allclose(out_mt, ref, atol=1e-4, rtol=1e-4)

    # 3) bf16-streamed input (half the HBM read traffic), f32 accumulate & output.
    out_bf16 = jax.block_until_ready(
        net_forward(x.astype(jnp.bfloat16), w1, b1, w2, b2))
    assert out_bf16.dtype == jnp.float32
    assert jnp.allclose(out_bf16, ref, atol=7.5e-2, rtol=5e-2)

    print("KERNEL_OK")
</pallas_src>

<mosaic_0001>
module attributes {stable_mosaic.version = 11 : i64} {
  func.func @_mlp_kernel(%arg0: i32, %arg1: memref<1000x29xf32, #tpu.memory_space<vmem>>, %arg2: memref<29x16xf32, #tpu.memory_space<vmem>>, %arg3: memref<1x16xf32, #tpu.memory_space<vmem>>, %arg4: memref<1x16xf32, #tpu.memory_space<vmem>>, %arg5: memref<1x1xf32, #tpu.memory_space<vmem>>, %arg6: memref<1000x1xf32, #tpu.memory_space<vmem>>) attributes {dimension_semantics = [#tpu.dimension_semantics<parallel>], iteration_bounds = array<i64: 1>, scalar_prefetch = 0 : i64, scratch_operands = 0 : i64, tpu.core_type = #tpu.core_type<tc>, window_params = [{transform_indices = @transform_0, window_bounds = array<i64: 1000, 29>}, {pipeline_mode = #tpu.pipeline_mode<synchronous>, transform_indices = @transform_1, window_bounds = array<i64: 29, 16>}, {pipeline_mode = #tpu.pipeline_mode<synchronous>, transform_indices = @transform_2, window_bounds = array<i64: 1, 16>}, {pipeline_mode = #tpu.pipeline_mode<synchronous>, transform_indices = @transform_3, window_bounds = array<i64: 1, 16>}, {pipeline_mode = #tpu.pipeline_mode<synchronous>, transform_indices = @transform_4, window_bounds = array<i64: 1, 1>}, {transform_indices = @transform_5, window_bounds = array<i64: 1000, 1>}]} {
    %c0 = arith.constant 0 : index
    %c0_0 = arith.constant 0 : index
    %0 = vector.load %arg1[%c0, %c0_0] : memref<1000x29xf32, #tpu.memory_space<vmem>>, vector<1000x29xf32>
    %c0_1 = arith.constant 0 : index
    %c0_2 = arith.constant 0 : index
    %1 = vector.load %arg2[%c0_1, %c0_2] : memref<29x16xf32, #tpu.memory_space<vmem>>, vector<29x16xf32>
    %cst = arith.constant dense<0.000000e+00> : vector<1000x16xf32>
    %2 = tpu.matmul %0, %1, %cst {dimension_numbers = #tpu.dot_dimension_numbers<[1], [0], [0], [1], [0, 0, 1, 1], [], []>} : vector<1000x29xf32>, vector<29x16xf32>, vector<1000x16xf32> -> vector<1000x16xf32>
    %c0_3 = arith.constant 0 : index
    %c0_4 = arith.constant 0 : index
    %3 = vector.load %arg3[%c0_3, %c0_4] : memref<1x16xf32, #tpu.memory_space<vmem>>, vector<1x16xf32>
    %4 = vector.broadcast %3 : vector<1x16xf32> to vector<1000x16xf32>
    %5 = arith.addf %2, %4 : vector<1000x16xf32>
    %cst_5 = arith.constant 0.000000e+00 : f32
    %6 = vector.broadcast %cst_5 : f32 to vector<1000x16xf32>
    %7 = arith.maximumf %5, %6 : vector<1000x16xf32>
    %c0_6 = arith.constant 0 : index
    %c0_7 = arith.constant 0 : index
    %8 = vector.load %arg4[%c0_6, %c0_7] : memref<1x16xf32, #tpu.memory_space<vmem>>, vector<1x16xf32>
    %9 = vector.broadcast %8 : vector<1x16xf32> to vector<1000x16xf32>
    %10 = arith.mulf %7, %9 : vector<1000x16xf32>
    %cst_8 = arith.constant dense<0.000000e+00> : vector<1000xf32>
    %11 = vector.multi_reduction <add>, %10, %cst_8 [1] : vector<1000x16xf32> to vector<1000xf32>
    %12 = vector.shape_cast %11 : vector<1000xf32> to vector<1000x1xf32>
    %c0_9 = arith.constant 0 : index
    %c0_10 = arith.constant 0 : index
    %13 = vector.load %arg5[%c0_9, %c0_10] : memref<1x1xf32, #tpu.memory_space<vmem>>, vector<1x1xf32>
    %14 = vector.broadcast %13 : vector<1x1xf32> to vector<1000x1xf32>
    %15 = arith.addf %12, %14 : vector<1000x1xf32>
    %c0_11 = arith.constant 0 : index
    %c0_12 = arith.constant 0 : index
    %16 = vector.load %arg6[%c0_11, %c0_12] : memref<1000x1xf32, #tpu.memory_space<vmem>>, vector<1000x1xf32>
    tpu.vector_store %arg6[%c0_11, %c0_12], %15 {strides = array<i32>} : memref<1000x1xf32, #tpu.memory_space<vmem>>, vector<1000x1xf32>,
    return
  }
  func.func @transform_0(%arg0: i32) -> (i32, i32) {
    %c0_i32 = arith.constant 0 : i32
    %c0_i32_0 = arith.constant 0 : i32
    return %arg0, %c0_i32 : i32, i32
  }
  func.func @transform_1(%arg0: i32) -> (i32, i32) {
    %c0_i32 = arith.constant 0 : i32
    %c0_i32_0 = arith.constant 0 : i32
    %c0_i32_1 = arith.constant 0 : i32
    return %c0_i32, %c0_i32_0 : i32, i32
  }
  func.func @transform_2(%arg0: i32) -> (i32, i32) {
    %c0_i32 = arith.constant 0 : i32
    %c0_i32_0 = arith.constant 0 : i32
    %c0_i32_1 = arith.constant 0 : i32
    return %c0_i32, %c0_i32_0 : i32, i32
  }
  func.func @transform_3(%arg0: i32) -> (i32, i32) {
    %c0_i32 = arith.constant 0 : i32
    %c0_i32_0 = arith.constant 0 : i32
    %c0_i32_1 = arith.constant 0 : i32
    return %c0_i32, %c0_i32_0 : i32, i32
  }
  func.func @transform_4(%arg0: i32) -> (i32, i32) {
    %c0_i32 = arith.constant 0 : i32
    %c0_i32_0 = arith.constant 0 : i32
    %c0_i32_1 = arith.constant 0 : i32
    return %c0_i32, %c0_i32_0 : i32, i32
  }
  func.func @transform_5(%arg0: i32) -> (i32, i32) {
    %c0_i32 = arith.constant 0 : i32
    %c0_i32_0 = arith.constant 0 : i32
    return %arg0, %c0_i32 : i32, i32
  }
}

</mosaic_0001>

<llo_original>
// kernel: tpu_custom_call.1
$region0: #{tpu_custom_call.1}
  #allocation0 [shape = 'u32[]', space=smem, size = 0x4, offset = 0x4, fixed_abs, tag = 'smem constant byte address 0x4 - core index']
  #allocation1 [shape = 'u32[144,128]{1,0:T(1,128)}', space=vmem, size = 0x12000, scoped, tag = 'internal scratch']
  #allocation2 [shape = 'f32[1,1]{1,0:T(1,128)S(1)}', space=vmem, size = 0x200, scoped, tag = 'scoped memory for tpu_custom_call.1']
  %s0 = inlined_call_operand.vmem [shape: f32[1000,29], index: 0, kind: input, shape index: {}]
  %s1 = inlined_call_operand.vmem [shape: f32[29,16], index: 1, kind: input, shape index: {}]
  %s2 = inlined_call_operand.vmem [shape: f32[1,16], index: 2, kind: input, shape index: {}]
  %s3 = inlined_call_operand.vmem [shape: f32[1,16], index: 3, kind: input, shape index: {}]
  %s4 = inlined_call_operand.<no memory space> [shape: f32[1,1], index: 4, kind: input, shape index: {}]
  %s5 = inlined_call_operand.vmem [shape: f32[1000,1], index: 5, kind: output, shape index: {}]
  %s6 = sld [smem:[#allocation0]]
  $region30: #{tpu_custom_call.1} parent=0
    _
  %s8 = ssub.s32 1, %s6
  %s9 = scalar_select 0, %s8, %s6
  %v10 = vstv %s4
  %11 = vst [vmem:[#allocation2] sm:$0x1] %v10
  // Predicated region
  $region2: #{tpu_custom_call.1} parent=0 // pred_check
    _
  $region3: #{tpu_custom_call.1} parent=0 // pred_check_branch
    %13 = sbr.rel (0) target = $region5
  $region4: #{tpu_custom_call.1} parent=0 // pred_region
    _
  $region5: #{tpu_custom_call.1} parent=0 // pred_fallthru
    _
  // Predicated region
  $region6: #{tpu_custom_call.1} parent=0 // pred_check
    _
  $region7: #{tpu_custom_call.1} parent=0 // pred_check_branch
    %15 = sbr.rel (0) target = $region9
  $region8: #{tpu_custom_call.1} parent=0 // pred_region
    _
  $region9: #{tpu_custom_call.1} parent=0 // pred_fallthru
    _
  // Predicated region
  $region10: #{tpu_custom_call.1} parent=0 // pred_check
    _
  $region11: #{tpu_custom_call.1} parent=0 // pred_check_branch
    %17 = sbr.rel (0) target = $region13
  $region12: #{tpu_custom_call.1} parent=0 // pred_region
    _
  $region13: #{tpu_custom_call.1} parent=0 // pred_fallthru
    _
  // Predicated region
  $region14: #{tpu_custom_call.1} parent=0 // pred_check
    _
  $region15: #{tpu_custom_call.1} parent=0 // pred_check_branch
    %19 = sbr.rel (0) target = $region17
  $region16: #{tpu_custom_call.1} parent=0 // pred_region
    _
  $region17: #{tpu_custom_call.1} parent=0 // pred_fallthru
    _
  // Predicated region
  $region18: #{tpu_custom_call.1} parent=0 // pred_check
    _
  $region19: #{tpu_custom_call.1} parent=0 // pred_check_branch
    %21 = sbr.rel (0) target = $region21
  $region20: #{tpu_custom_call.1} parent=0 // pred_region
    _
  $region21: #{tpu_custom_call.1} parent=0 // pred_fallthru
    _
  %v22 = vld [vmem:[%s0] sm:$0xff]
  %v23 = vld [vmem:[%s0 + $0x8] sm:$0xff]
  %v24 = vld [vmem:[%s0 + $0x10] sm:$0xff]
  %v25 = vld [vmem:[%s0 + $0x18] sm:$0xff]
  %v26 = vld [vmem:[%s0 + $0x20] sm:$0xff]
  %v27 = vld [vmem:[%s0 + $0x28] sm:$0xff]
  %v28 = vld [vmem:[%s0 + $0x30] sm:$0xff]
  %v29 = vld [vmem:[%s0 + $0x38] sm:$0xff]
  %v30 = vld [vmem:[%s0 + $0x40] sm:$0xff]
  %v31 = vld [vmem:[%s0 + $0x48] sm:$0xff]
  %v32 = vld [vmem:[%s0 + $0x50] sm:$0xff]
  %v33 = vld [vmem:[%s0 + $0x58] sm:$0xff]
  %v34 = vld [vmem:[%s0 + $0x60] sm:$0xff]
  %v35 = vld [vmem:[%s0 + $0x68] sm:$0xff]
  %v36 = vld [vmem:[%s0 + $0x70] sm:$0xff]
  %v37 = vld [vmem:[%s0 + $0x78] sm:$0xff]
  %v38 = vld [vmem:[%s0 + $0x80] sm:$0xff]
  %v39 = vld [vmem:[%s0 + $0x88] sm:$0xff]
  %v40 = vld [vmem:[%s0 + $0x90] sm:$0xff]
  %v41 = vld [vmem:[%s0 + $0x98] sm:$0xff]
  %v42 = vld [vmem:[%s0 + $0xa0] sm:$0xff]
  %v43 = vld [vmem:[%s0 + $0xa8] sm:$0xff]
  %v44 = vld [vmem:[%s0 + $0xb0] sm:$0xff]
  %v45 = vld [vmem:[%s0 + $0xb8] sm:$0xff]
  %v46 = vld [vmem:[%s0 + $0xc0] sm:$0xff]
  %v47 = vld [vmem:[%s0 + $0xc8] sm:$0xff]
  %v48 = vld [vmem:[%s0 + $0xd0] sm:$0xff]
  %v49 = vld [vmem:[%s0 + $0xd8] sm:$0xff]
  %v50 = vld [vmem:[%s0 + $0xe0] sm:$0xff]
  %v51 = vld [vmem:[%s0 + $0xe8] sm:$0xff]
  %v52 = vld [vmem:[%s0 + $0xf0] sm:$0xff]
  %v53 = vld [vmem:[%s0 + $0xf8] sm:$0xff]
  %v54 = vld [vmem:[%s0 + $0x100] sm:$0xff]
  %v55 = vld [vmem:[%s0 + $0x108] sm:$0xff]
  %v56 = vld [vmem:[%s0 + $0x110] sm:$0xff]
  %v57 = vld [vmem:[%s0 + $0x118] sm:$0xff]
  %v58 = vld [vmem:[%s0 + $0x120] sm:$0xff]
  %v59 = vld [vmem:[%s0 + $0x128] sm:$0xff]
  %v60 = vld [vmem:[%s0 + $0x130] sm:$0xff]
  %v61 = vld [vmem:[%s0 + $0x138] sm:$0xff]
  %v62 = vld [vmem:[%s0 + $0x140] sm:$0xff]
  %v63 = vld [vmem:[%s0 + $0x148] sm:$0xff]
  %v64 = vld [vmem:[%s0 + $0x150] sm:$0xff]
  %v65 = vld [vmem:[%s0 + $0x158] sm:$0xff]
  %v66 = vld [vmem:[%s0 + $0x160] sm:$0xff]
  %v67 = vld [vmem:[%s0 + $0x168] sm:$0xff]
  %v68 = vld [vmem:[%s0 + $0x170] sm:$0xff]
  %v69 = vld [vmem:[%s0 + $0x178] sm:$0xff]
  %v70 = vld [vmem:[%s0 + $0x180] sm:$0xff]
  %v71 = vld [vmem:[%s0 + $0x188] sm:$0xff]
  %v72 = vld [vmem:[%s0 + $0x190] sm:$0xff]
  %v73 = vld [vmem:[%s0 + $0x198] sm:$0xff]
  %v74 = vld [vmem:[%s0 + $0x1a0] sm:$0xff]
  %v75 = vld [vmem:[%s0 + $0x1a8] sm:$0xff]
  %v76 = vld [vmem:[%s0 + $0x1b0] sm:$0xff]
  %v77 = vld [vmem:[%s0 + $0x1b8] sm:$0xff]
  %v78 = vld [vmem:[%s0 + $0x1c0] sm:$0xff]
  %v79 = vld [vmem:[%s0 + $0x1c8] sm:$0xff]
  %v80 = vld [vmem:[%s0 + $0x1d0] sm:$0xff]
  %v81 = vld [vmem:[%s0 + $0x1d8] sm:$0xff]
  %v82 = vld [vmem:[%s0 + $0x1e0] sm:$0xff]
  %v83 = vld [vmem:[%s0 + $0x1e8] sm:$0xff]
  %v84 = vld [vmem:[%s0 + $0x1f0] sm:$0xff]
  %v85 = vld [vmem:[%s0 + $0x1f8] sm:$0xff]
  %v86 = vld [vmem:[%s0 + $0x200] sm:$0xff]
  %v87 = vld [vmem:[%s0 + $0x208] sm:$0xff]
  %v88 = vld [vmem:[%s0 + $0x210] sm:$0xff]
  %v89 = vld [vmem:[%s0 + $0x218] sm:$0xff]
  %v90 = vld [vmem:[%s0 + $0x220] sm:$0xff]
  %v91 = vld [vmem:[%s0 + $0x228] sm:$0xff]
  %v92 = vld [vmem:[%s0 + $0x230] sm:$0xff]
  %v93 = vld [vmem:[%s0 + $0x238] sm:$0xff]
  %v94 = vld [vmem:[%s0 + $0x240] sm:$0xff]
  %v95 = vld [vmem:[%s0 + $0x248] sm:$0xff]
  %v96 = vld [vmem:[%s0 + $0x250] sm:$0xff]
  %v97 = vld [vmem:[%s0 + $0x258] sm:$0xff]
  %v98 = vld [vmem:[%s0 + $0x260] sm:$0xff]
  %v99 = vld [vmem:[%s0 + $0x268] sm:$0xff]
  %v100 = vld [vmem:[%s0 + $0x270] sm:$0xff]
  %v101 = vld [vmem:[%s0 + $0x278] sm:$0xff]
  %v102 = vld [vmem:[%s0 + $0x280] sm:$0xff]
  %v103 = vld [vmem:[%s0 + $0x288] sm:$0xff]
  %v104 = vld [vmem:[%s0 + $0x290] sm:$0xff]
  %v105 = vld [vmem:[%s0 + $0x298] sm:$0xff]
  %v106 = vld [vmem:[%s0 + $0x2a0] sm:$0xff]
  %v107 = vld [vmem:[%s0 + $0x2a8] sm:$0xff]
  %v108 = vld [vmem:[%s0 + $0x2b0] sm:$0xff]
  %v109 = vld [vmem:[%s0 + $0x2b8] sm:$0xff]
  %v110 = vld [vmem:[%s0 + $0x2c0] sm:$0xff]
  %v111 = vld [vmem:[%s0 + $0x2c8] sm:$0xff]
  %v112 = vld [vmem:[%s0 + $0x2d0] sm:$0xff]
  %v113 = vld [vmem:[%s0 + $0x2d8] sm:$0xff]
  %v114 = vld [vmem:[%s0 + $0x2e0] sm:$0xff]
  %v115 = vld [vmem:[%s0 + $0x2e8] sm:$0xff]
  %v116 = vld [vmem:[%s0 + $0x2f0] sm:$0xff]
  %v117 = vld [vmem:[%s0 + $0x2f8] sm:$0xff]
  %v118 = vld [vmem:[%s0 + $0x300] sm:$0xff]
  %v119 = vld [vmem:[%s0 + $0x308] sm:$0xff]
  %v120 = vld [vmem:[%s0 + $0x310] sm:$0xff]
  %v121 = vld [vmem:[%s0 + $0x318] sm:$0xff]
  %v122 = vld [vmem:[%s0 + $0x320] sm:$0xff]
  %v123 = vld [vmem:[%s0 + $0x328] sm:$0xff]
  %v124 = vld [vmem:[%s0 + $0x330] sm:$0xff]
  %v125 = vld [vmem:[%s0 + $0x338] sm:$0xff]
  %v126 = vld [vmem:[%s0 + $0x340] sm:$0xff]
  %v127 = vld [vmem:[%s0 + $0x348] sm:$0xff]
  %v128 = vld [vmem:[%s0 + $0x350] sm:$0xff]
  %v129 = vld [vmem:[%s0 + $0x358] sm:$0xff]
  %v130 = vld [vmem:[%s0 + $0x360] sm:$0xff]
  %v131 = vld [vmem:[%s0 + $0x368] sm:$0xff]
  %v132 = vld [vmem:[%s0 + $0x370] sm:$0xff]
  %v133 = vld [vmem:[%s0 + $0x378] sm:$0xff]
  %v134 = vld [vmem:[%s0 + $0x380] sm:$0xff]
  %v135 = vld [vmem:[%s0 + $0x388] sm:$0xff]
  %v136 = vld [vmem:[%s0 + $0x390] sm:$0xff]
  %v137 = vld [vmem:[%s0 + $0x398] sm:$0xff]
  %v138 = vld [vmem:[%s0 + $0x3a0] sm:$0xff]
  %v139 = vld [vmem:[%s0 + $0x3a8] sm:$0xff]
  %v140 = vld [vmem:[%s0 + $0x3b0] sm:$0xff]
  %v141 = vld [vmem:[%s0 + $0x3b8] sm:$0xff]
  %v142 = vld [vmem:[%s0 + $0x3c0] sm:$0xff]
  %v143 = vld [vmem:[%s0 + $0x3c8] sm:$0xff]
  %v144 = vld [vmem:[%s0 + $0x3d0] sm:$0xff]
  %v145 = vld [vmem:[%s0 + $0x3d8] sm:$0xff]
  %v146 = vld [vmem:[%s0 + $0x3e0] sm:$0xff]
  %v147 = vld [vmem:[%s1] sm:$0xff]
  %v148 = vld [vmem:[%s1 + $0x8] sm:$0xff]
  %v149 = vld [vmem:[%s1 + $0x10] sm:$0xff]
  %v150 = vld [vmem:[%s1 + $0x18] sm:$0x1f]
  %v151 = vld [vmem:[%s2] sm:$0x1]
  %v153 = vlaneseq
  %v154 = vshrl.u32 %v153, 7
  %v155 = vsub.s32 0, %v154
  %v156 = vrot.slane %v151, %v155
  %vm158 = vcmask 236544
  %v160 = vsel %vm158, %v22, 0
  %v163 = vsel %vm158, %v23, 0
  %v166 = vsel %vm158, %v24, 0
  %v169 = vsel %vm158, %v25, 0
  %v172 = vsel %vm158, %v26, 0
  %v175 = vsel %vm158, %v27, 0
  %v178 = vsel %vm158, %v28, 0
  %v181 = vsel %vm158, %v29, 0
  %v184 = vsel %vm158, %v30, 0
  %v187 = vsel %vm158, %v31, 0
  %v190 = vsel %vm158, %v32, 0
  %v193 = vsel %vm158, %v33, 0
  %v196 = vsel %vm158, %v34, 0
  %v199 = vsel %vm158, %v35, 0
  %v202 = vsel %vm158, %v36, 0
  %v205 = vsel %vm158, %v37, 0
  %v208 = vsel %vm158, %v38, 0
  %v211 = vsel %vm158, %v39, 0
  %v214 = vsel %vm158, %v40, 0
  %v217 = vsel %vm158, %v41, 0
  %v220 = vsel %vm158, %v42, 0
  %v223 = vsel %vm158, %v43, 0
  %v226 = vsel %vm158, %v44, 0
  %v229 = vsel %vm158, %v45, 0
  %v232 = vsel %vm158, %v46, 0
  %v235 = vsel %vm158, %v47, 0
  %v238 = vsel %vm158, %v48, 0
  %v241 = vsel %vm158, %v49, 0
  %v244 = vsel %vm158, %v50, 0
  %v247 = vsel %vm158, %v51, 0
  %v250 = vsel %vm158, %v52, 0
  %v253 = vsel %vm158, %v53, 0
  %v256 = vsel %vm158, %v54, 0
  %v259 = vsel %vm158, %v55, 0
  %v262 = vsel %vm158, %v56, 0
  %v265 = vsel %vm158, %v57, 0
  %v268 = vsel %vm158, %v58, 0
  %v271 = vsel %vm158, %v59, 0
  %v274 = vsel %vm158, %v60, 0
  %v277 = vsel %vm158, %v61, 0
  %v280 = vsel %vm158, %v62, 0
  %v283 = vsel %vm158, %v63, 0
  %v286 = vsel %vm158, %v64, 0
  %v289 = vsel %vm158, %v65, 0
  %v292 = vsel %vm158, %v66, 0
  %v295 = vsel %vm158, %v67, 0
  %v298 = vsel %vm158, %v68, 0
  %v301 = vsel %vm158, %v69, 0
  %v304 = vsel %vm158, %v70, 0
  %v307 = vsel %vm158, %v71, 0
  %v310 = vsel %vm158, %v72, 0
  %v313 = vsel %vm158, %v73, 0
  %v316 = vsel %vm158, %v74, 0
  %v319 = vsel %vm158, %v75, 0
  %v322 = vsel %vm158, %v76, 0
  %v325 = vsel %vm158, %v77, 0
  %v328 = vsel %vm158, %v78, 0
  %v331 = vsel %vm158, %v79, 0
  %v334 = vsel %vm158, %v80, 0
  %v337 = vsel %vm158, %v81, 0
  %v340 = vsel %vm158, %v82, 0
  %v343 = vsel %vm158, %v83, 0
  %v346 = vsel %vm158, %v84, 0
  %v349 = vsel %vm158, %v85, 0
  %v352 = vsel %vm158, %v86, 0
  %v355 = vsel %vm158, %v87, 0
  %v358 = vsel %vm158, %v88, 0
  %v361 = vsel %vm158, %v89, 0
  %v364 = vsel %vm158, %v90, 0
  %v367 = vsel %vm158, %v91, 0
  %v370 = vsel %vm158, %v92, 0
  %v373 = vsel %vm158, %v93, 0
  %v376 = vsel %vm158, %v94, 0
  %v379 = vsel %vm158, %v95, 0
  %v382 = vsel %vm158, %v96, 0
  %v385 = vsel %vm158, %v97, 0
  %v388 = vsel %vm158, %v98, 0
  %v391 = vsel %vm158, %v99, 0
  %v394 = vsel %vm158, %v100, 0
  %v397 = vsel %vm158, %v101, 0
  %v400 = vsel %vm158, %v102, 0
  %v403 = vsel %vm158, %v103, 0
  %v406 = vsel %vm158, %v104, 0
  %v409 = vsel %vm158, %v105, 0
  %v412 = vsel %vm158, %v106, 0
  %v415 = vsel %vm158, %v107, 0
  %v418 = vsel %vm158, %v108, 0
  %v421 = vsel %vm158, %v109, 0
  %v424 = vsel %vm158, %v110, 0
  %v427 = vsel %vm158, %v111, 0
  %v430 = vsel %vm158, %v112, 0
  %v433 = vsel %vm158, %v113, 0
  %v436 = vsel %vm158, %v114, 0
  %v439 = vsel %vm158, %v115, 0
  %v442 = vsel %vm158, %v116, 0
  %v445 = vsel %vm158, %v117, 0
  %v448 = vsel %vm158, %v118, 0
  %v451 = vsel %vm158, %v119, 0
  %v454 = vsel %vm158, %v120, 0
  %v457 = vsel %vm158, %v121, 0
  %v460 = vsel %vm158, %v122, 0
  %v463 = vsel %vm158, %v123, 0
  %v466 = vsel %vm158, %v124, 0
  %v469 = vsel %vm158, %v125, 0
  %v472 = vsel %vm158, %v126, 0
  %v475 = vsel %vm158, %v127, 0
  %v478 = vsel %vm158, %v128, 0
  %v481 = vsel %vm158, %v129, 0
  %v484 = vsel %vm158, %v130, 0
  %v487 = vsel %vm158, %v131, 0
  %v490 = vsel %vm158, %v132, 0
  %v493 = vsel %vm158, %v133, 0
  %v496 = vsel %vm158, %v134, 0
  %v499 = vsel %vm158, %v135, 0
  %v502 = vsel %vm158, %v136, 0
  %v505 = vsel %vm158, %v137, 0
  %v508 = vsel %vm158, %v138, 0
  %v511 = vsel %vm158, %v139, 0
  %v514 = vsel %vm158, %v140, 0
  %v517 = vsel %vm158, %v141, 0
  %v520 = vsel %vm158, %v142, 0
  %v523 = vsel %vm158, %v143, 0
  %v526 = vsel %vm158, %v144, 0
  %v529 = vsel %vm158, %v145, 0
  %v532 = vsel %vm158, %v146, 0
  %vm534 = vcmask 1044480
  %v536 = vsel %vm534, %v150, 0
  %538 = vmatprep.subr.mxu0 0.0
  %539 = vmatpush1.msra.mxu0 %v147
  %540 = vmatprep.subr.mxu0 0.0
  %541 = vmatpush1.msra.mxu0 %v148
  %542 = vmatprep.subr.mxu0 0.0
  %543 = vmatpush1.msra.mxu0 %v149
  %544 = vmatprep.subr.mxu0 0.0
  %545 = vmatpush1.msra.mxu0 %v536
  %546 = vmatprep.subr.mxu0 0.0
  %547 = vmatpush1.msra.mxu0 0.0
  %548 = vmatprep.subr.mxu0 0.0
  %549 = vmatpush1.msra.mxu0 0.0
  %550 = vmatprep.subr.mxu0 0.0
  %551 = vmatpush1.msra.mxu0 0.0
  %552 = vmatprep.subr.mxu0 0.0
  %553 = vmatpush1.msra.mxu0 0.0
  %554 = vmatprep.subr.mxu0 0.0
  %555 = vmatpush1.msra.mxu0 0.0
  %556 = vmatprep.subr.mxu0 0.0
  %557 = vmatpush1.msra.mxu0 0.0
  %558 = vmatprep.subr.mxu0 0.0
  %559 = vmatpush1.msra.mxu0 0.0
  %560 = vmatprep.subr.mxu0 0.0
  %561 = vmatpush1.msra.mxu0 0.0
  %562 = vmatprep.subr.mxu0 0.0
  %563 = vmatpush1.msra.mxu0 0.0
  %564 = vmatprep.subr.mxu0 0.0
  %565 = vmatpush1.msra.mxu0 0.0
  %566 = vmatprep.subr.mxu0 0.0
  %567 = vmatpush1.msra.mxu0 0.0
  %568 = vmatprep.subr.mxu0 0.0
  %569 = vmatpush1.msra.mxu0 0.0
  %570 = vmatprep.subr.mxu0 0.0
  %571 = vmatpush1.msra.mxu0 0.0
  %572 = vmatprep.subr.mxu0 0.0
  %573 = vmatpush1.msra.mxu0 0.0
  %574 = vmatprep.subr.mxu0 0.0
  %575 = vmatpush1.msra.mxu0 0.0
  %576 = vmatprep.subr.mxu0 0.0
  %577 = vmatpush1.msra.mxu0 0.0
  %578 = vmatprep.subr.mxu0 0.0
  %579 = vmatpush1.msra.mxu0 0.0
  %580 = vmatprep.subr.mxu0 0.0
  %581 = vmatpush1.msra.mxu0 0.0
  %582 = vmatprep.subr.mxu0 0.0
  %583 = vmatpush1.msra.mxu0 0.0
  %584 = vmatprep.subr.mxu0 0.0
  %585 = vmatpush1.msra.mxu0 0.0
  %586 = vmatprep.subr.mxu0 0.0
  %587 = vmatpush1.msra.mxu0 0.0
  %588 = vmatprep.subr.mxu0 0.0
  %589 = vmatpush1.msra.mxu0 0.0
  %590 = vmatprep.subr.mxu0 0.0
  %591 = vmatpush1.msra.mxu0 0.0
  %592 = vmatprep.subr.mxu0 0.0
  %593 = vmatpush1.msra.mxu0 0.0
  %594 = vmatprep.subr.mxu0 0.0
  %595 = vmatpush1.msra.mxu0 0.0
  %596 = vmatprep.subr.mxu0 0.0
  %597 = vmatpush1.msra.mxu0 0.0
  %598 = vmatprep.subr.mxu0 0.0
  %599 = vmatpush1.msra.mxu0 0.0
  %600 = vmatprep.subr.mxu0 0.0
  %601 = vmatpush1.msra.mxu0 0.0
  %602 = vmatprep.mubr.f32.mxu0 0.0
  %603 = vmatmul.mubr.f32.gmra.mrb[0].mxu0 %v160
  %v604 = vpop.f32.mrb[0].mxu0
  %v605 = vadd.f32 %v156, %v604
  %v606 = vpop.f32.mrb[0].mxu0
  %607 = vmatprep.mubr.f32.mxu0 0.0
  %608 = vmatmul.mubr.f32.gmra.mrb[0].mxu0 %v163
  %v609 = vpop.f32.mrb[0].mxu0
  %v610 = vadd.f32 %v156, %v609
  %v611 = vpop.f32.mrb[0].mxu0
  %612 = vmatprep.mubr.f32.mxu0 0.0
  %613 = vmatmul.mubr.f32.gmra.mrb[0].mxu0 %v166
  %v614 = vpop.f32.mrb[0].mxu0
  %v615 = vadd.f32 %v156, %v614
  %v616 = vpop.f32.mrb[0].mxu0
  %617 = vmatprep.mubr.f32.mxu0 0.0
  %618 = vmatmul.mubr.f32.gmra.mrb[0].mxu0 %v169
  %v619 = vpop.f32.mrb[0].mxu0
  %v620 = vadd.f32 %v156, %v619
  %v621 = vpop.f32.mrb[0].mxu0
  %622 = vmatprep.mubr.f32.mxu0 0.0
  %623 = vmatmul.mubr.f32.gmra.mrb[0].mxu0 %v172
  %v624 = vpop.f32.mrb[0].mxu0
  %v625 = vadd.f32 %v156, %v624
  %v626 = vpop.f32.mrb[0].mxu0
  %627 = vmatprep.mubr.f32.mxu0 0.0
  %628 = vmatmul.mubr.f32.gmra.mrb[0].mxu0 %v175
  %v629 = vpop.f32.mrb[0].mxu0
  %v630 = vadd.f32 %v156, %v629
  %v631 = vpop.f32.mrb[0].mxu0
  %632 = vmatprep.mubr.f32.mxu0 0.0
  %633 = vmatmul.mubr.f32.gmra.mrb[0].mxu0 %v178
  %v634 = vpop.f32.mrb[0].mxu0
  %v635 = vadd.f32 %v156, %v634
  %v636 = vpop.f32.mrb[0].mxu0
  %637 = vmatprep.mubr.f32.mxu0 0.0
  %638 = vmatmul.mubr.f32.gmra.mrb[0].mxu0 %v181
  %v639 = vpop.f32.mrb[0].mxu0
  %v640 = vadd.f32 %v156, %v639
  %v641 = vpop.f32.mrb[0].mxu0
  %642 = vmatprep.mubr.f32.mxu0 0.0
  %643 = vmatmul.mubr.f32.gmra.mrb[0].mxu0 %v184
  %v644 = vpop.f32.mrb[0].mxu0
  %v645 = vadd.f32 %v156, %v644
  %v646 = vpop.f32.mrb[0].mxu0
  %647 = vmatprep.mubr.f32.mxu0 0.0
  %648 = vmatmul.mubr.f32.gmra.mrb[0].mxu0 %v187
  %v649 = vpop.f32.mrb[0].mxu0
  %v650 = vadd.f32 %v156, %v649
  %v651 = vpop.f32.mrb[0].mxu0
  %652 = vmatprep.mubr.f32.mxu0 0.0
  %653 = vmatmul.mubr.f32.gmra.mrb[0].mxu0 %v190
  %v654 = vpop.f32.mrb[0].mxu0
  %v655 = vadd.f32 %v156, %v654
  %v656 = vpop.f32.mrb[0].mxu0
  %657 = vmatprep.mubr.f32.mxu0 0.0
  %658 = vmatmul.mubr.f32.gmra.mrb[0].mxu0 %v193
  %v659 = vpop.f32.mrb[0].mxu0
  %v660 = vadd.f32 %v156, %v659
  %v661 = vpop.f32.mrb[0].mxu0
  %662 = vmatprep.mubr.f32.mxu0 0.0
  %663 = vmatmul.mubr.f32.gmra.mrb[0].mxu0 %v196
  %v664 = vpop.f32.mrb[0].mxu0
  %v665 = vadd.f32 %v156, %v664
  %v666 = vpop.f32.mrb[0].mxu0
  %667 = vmatprep.mubr.f32.mxu0 0.0
  %668 = vmatmul.mubr.f32.gmra.mrb[0].mxu0 %v199
  %v669 = vpop.f32.mrb[0].mxu0
  %v670 = vadd.f32 %v156, %v669
  %v671 = vpop.f32.mrb[0].mxu0
  %672 = vmatprep.mubr.f32.mxu0 0.0
  %673 = vmatmul.mubr.f32.gmra.mrb[0].mxu0 %v202
  %v674 = vpop.f32.mrb[0].mxu0
  %v675 = vadd.f32 %v156, %v674
  %v676 = vpop.f32.mrb[0].mxu0
  %677 = vmatprep.mubr.f32.mxu0 0.0
  %678 = vmatmul.mubr.f32.gmra.mrb[0].mxu0 %v205
  %v679 = vpop.f32.mrb[0].mxu0
  %v680 = vadd.f32 %v156, %v679
  %v681 = vpop.f32.mrb[0].mxu0
  %682 = vmatprep.mubr.f32.mxu0 0.0
  %683 = vmatmul.mubr.f32.gmra.mrb[0].mxu0 %v208
  %v684 = vpop.f32.mrb[0].mxu0
  %v685 = vadd.f32 %v156, %v684
  %v686 = vpop.f32.mrb[0].mxu0
  %687 = vmatprep.mubr.f32.mxu0 0.0
  %688 = vmatmul.mubr.f32.gmra.mrb[0].mxu0 %v211
  %v689 = vpop.f32.mrb[0].mxu0
  %v690 = vadd.f32 %v156, %v689
  %v691 = vpop.f32.mrb[0].mxu0
  %692 = vmatprep.mubr.f32.mxu0 0.0
  %693 = vmatmul.mubr.f32.gmra.mrb[0].mxu0 %v214
  %v694 = vpop.f32.mrb[0].mxu0
  %v695 = vadd.f32 %v156, %v694
  %v696 = vpop.f32.mrb[0].mxu0
  %697 = vmatprep.mubr.f32.mxu0 0.0
  %698 = vmatmul.mubr.f32.gmra.mrb[0].mxu0 %v217
  %v699 = vpop.f32.mrb[0].mxu0
  %v700 = vadd.f32 %v156, %v699
  %v701 = vpop.f32.mrb[0].mxu0
  %702 = vmatprep.mubr.f32.mxu0 0.0
  %703 = vmatmul.mubr.f32.gmra.mrb[0].mxu0 %v220
  %v704 = vpop.f32.mrb[0].mxu0
  %v705 = vadd.f32 %v156, %v704
  %v706 = vpop.f32.mrb[0].mxu0
  %707 = vmatprep.mubr.f32.mxu0 0.0
  %708 = vmatmul.mubr.f32.gmra.mrb[0].mxu0 %v223
  %v709 = vpop.f32.mrb[0].mxu0
  %v710 = vadd.f32 %v156, %v709
  %v711 = vpop.f32.mrb[0].mxu0
  %712 = vmatprep.mubr.f32.mxu0 0.0
  %713 = vmatmul.mubr.f32.gmra.mrb[0].mxu0 %v226
  %v714 = vpop.f32.mrb[0].mxu0
  %v715 = vadd.f32 %v156, %v714
  %v716 = vpop.f32.mrb[0].mxu0
  %717 = vmatprep.mubr.f32.mxu0 0.0
  %718 = vmatmul.mubr.f32.gmra.mrb[0].mxu0 %v229
  %v719 = vpop.f32.mrb[0].mxu0
  %v720 = vadd.f32 %v156, %v719
  %v721 = vpop.f32.mrb[0].mxu0
  %722 = vmatprep.mubr.f32.mxu0 0.0
  %723 = vmatmul.mubr.f32.gmra.mrb[0].mxu0 %v232
  %v724 = vpop.f32.mrb[0].mxu0
  %v725 = vadd.f32 %v156, %v724
  %v726 = vpop.f32.mrb[0].mxu0
  %727 = vmatprep.mubr.f32.mxu0 0.0
  %728 = vmatmul.mubr.f32.gmra.mrb[0].mxu0 %v235
  %v729 = vpop.f32.mrb[0].mxu0
  %v730 = vadd.f32 %v156, %v729
  %v731 = vpop.f32.mrb[0].mxu0
  %732 = vmatprep.mubr.f32.mxu0 0.0
  %733 = vmatmul.mubr.f32.gmra.mrb[0].mxu0 %v238
  %v734 = vpop.f32.mrb[0].mxu0
  %v735 = vadd.f32 %v156, %v734
  %v736 = vpop.f32.mrb[0].mxu0
  %737 = vmatprep.mubr.f32.mxu0 0.0
  %738 = vmatmul.mubr.f32.gmra.mrb[0].mxu0 %v241
  %v739 = vpop.f32.mrb[0].mxu0
  %v740 = vadd.f32 %v156, %v739
  %v741 = vpop.f32.mrb[0].mxu0
  %742 = vmatprep.mubr.f32.mxu0 0.0
  %743 = vmatmul.mubr.f32.gmra.mrb[0].mxu0 %v244
  %v744 = vpop.f32.mrb[0].mxu0
  %v745 = vadd.f32 %v156, %v744
  %v746 = vpop.f32.mrb[0].mxu0
  %747 = vmatprep.mubr.f32.mxu0 0.0
  %748 = vmatmul.mubr.f32.gmra.mrb[0].mxu0 %v247
  %v749 = vpop.f32.mrb[0].mxu0
  %v750 = vadd.f32 %v156, %v749
  %v751 = vpop.f32.mrb[0].mxu0
  %752 = vmatprep.mubr.f32.mxu0 0.0
  %753 = vmatmul.mubr.f32.gmra.mrb[0].mxu0 %v250
  %v754 = vpop.f32.mrb[0].mxu0
  %v755 = vadd.f32 %v156, %v754
  %v756 = vpop.f32.mrb[0].mxu0
  %757 = vmatprep.mubr.f32.mxu0 0.0
  %758 = vmatmul.mubr.f32.gmra.mrb[0].mxu0 %v253
  %v759 = vpop.f32.mrb[0].mxu0
  %v760 = vadd.f32 %v156, %v759
  %v761 = vpop.f32.mrb[0].mxu0
  %762 = vmatprep.mubr.f32.mxu0 0.0
  %763 = vmatmul.mubr.f32.gmra.mrb[0].mxu0 %v256
  %v764 = vpop.f32.mrb[0].mxu0
  %v765 = vadd.f32 %v156, %v764
  %v766 = vpop.f32.mrb[0].mxu0
  %767 = vmatprep.mubr.f32.mxu0 0.0
  %768 = vmatmul.mubr.f32.gmra.mrb[0].mxu0 %v259
  %v769 = vpop.f32.mrb[0].mxu0
  %v770 = vadd.f32 %v156, %v769
  %v771 = vpop.f32.mrb[0].mxu0
  %772 = vmatprep.mubr.f32.mxu0 0.0
  %773 = vmatmul.mubr.f32.gmra.mrb[0].mxu0 %v262
  %v774 = vpop.f32.mrb[0].mxu0
  %v775 = vadd.f32 %v156, %v774
  %v776 = vpop.f32.mrb[0].mxu0
  %777 = vmatprep.mubr.f32.mxu0 0.0
  %778 = vmatmul.mubr.f32.gmra.mrb[0].mxu0 %v265
  %v779 = vpop.f32.mrb[0].mxu0
  %v780 = vadd.f32 %v156, %v779
  %v781 = vpop.f32.mrb[0].mxu0
  %782 = vmatprep.mubr.f32.mxu0 0.0
  %783 = vmatmul.mubr.f32.gmra.mrb[0].mxu0 %v268
  %v784 = vpop.f32.mrb[0].mxu0
  %v785 = vadd.f32 %v156, %v784
  %v786 = vpop.f32.mrb[0].mxu0
  %787 = vmatprep.mubr.f32.mxu0 0.0
  %788 = vmatmul.mubr.f32.gmra.mrb[0].mxu0 %v271
  %v789 = vpop.f32.mrb[0].mxu0
  %v790 = vadd.f32 %v156, %v789
  %v791 = vpop.f32.mrb[0].mxu0
  %792 = vmatprep.mubr.f32.mxu0 0.0
  %793 = vmatmul.mubr.f32.gmra.mrb[0].mxu0 %v274
  %v794 = vpop.f32.mrb[0].mxu0
  %v795 = vadd.f32 %v156, %v794
  %v796 = vpop.f32.mrb[0].mxu0
  %797 = vmatprep.mubr.f32.mxu0 0.0
  %798 = vmatmul.mubr.f32.gmra.mrb[0].mxu0 %v277
  %v799 = vpop.f32.mrb[0].mxu0
  %v800 = vadd.f32 %v156, %v799
  %v801 = vpop.f32.mrb[0].mxu0
  %802 = vmatprep.mubr.f32.mxu0 0.0
  %803 = vmatmul.mubr.f32.gmra.mrb[0].mxu0 %v280
  %v804 = vpop.f32.mrb[0].mxu0
  %v805 = vadd.f32 %v156, %v804
  %v806 = vpop.f32.mrb[0].mxu0
  %807 = vmatprep.mubr.f32.mxu0 0.0
  %808 = vmatmul.mubr.f32.gmra.mrb[0].mxu0 %v283
  %v809 = vpop.f32.mrb[0].mxu0
  %v810 = vadd.f32 %v156, %v809
  %v811 = vpop.f32.mrb[0].mxu0
  %812 = vmatprep.mubr.f32.mxu0 0.0
  %813 = vmatmul.mubr.f32.gmra.mrb[0].mxu0 %v286
  %v814 = vpop.f32.mrb[0].mxu0
  %v815 = vadd.f32 %v156, %v814
  %v816 = vpop.f32.mrb[0].mxu0
  %817 = vmatprep.mubr.f32.mxu0 0.0
  %818 = vmatmul.mubr.f32.gmra.mrb[0].mxu0 %v289
  %v819 = vpop.f32.mrb[0].mxu0
  %v820 = vadd.f32 %v156, %v819
  %v821 = vpop.f32.mrb[0].mxu0
  %822 = vmatprep.mubr.f32.mxu0 0.0
  %823 = vmatmul.mubr.f32.gmra.mrb[0].mxu0 %v292
  %v824 = vpop.f32.mrb[0].mxu0
  %v825 = vadd.f32 %v156, %v824
  %v826 = vpop.f32.mrb[0].mxu0
  %827 = vmatprep.mubr.f32.mxu0 0.0
  %828 = vmatmul.mubr.f32.gmra.mrb[0].mxu0 %v295
  %v829 = vpop.f32.mrb[0].mxu0
  %v830 = vadd.f32 %v156, %v829
  %v831 = vpop.f32.mrb[0].mxu0
  %832 = vmatprep.mubr.f32.mxu0 0.0
  %833 = vmatmul.mubr.f32.gmra.mrb[0].mxu0 %v298
  %v834 = vpop.f32.mrb[0].mxu0
  %v835 = vadd.f32 %v156, %v834
  %v836 = vpop.f32.mrb[0].mxu0
  %837 = vmatprep.mubr.f32.mxu0 0.0
  %838 = vmatmul.mubr.f32.gmra.mrb[0].mxu0 %v301
  %v839 = vpop.f32.mrb[0].mxu0
  %v840 = vadd.f32 %v156, %v839
  %v841 = vpop.f32.mrb[0].mxu0
  %842 = vmatprep.mubr.f32.mxu0 0.0
  %843 = vmatmul.mubr.f32.gmra.mrb[0].mxu0 %v304
  %v844 = vpop.f32.mrb[0].mxu0
  %v845 = vadd.f32 %v156, %v844
  %v846 = vpop.f32.mrb[0].mxu0
  %847 = vmatprep.mubr.f32.mxu0 0.0
  %848 = vmatmul.mubr.f32.gmra.mrb[0].mxu0 %v307
  %v849 = vpop.f32.mrb[0].mxu0
  %v850 = vadd.f32 %v156, %v849
  %v851 = vpop.f32.mrb[0].mxu0
  %852 = vmatprep.mubr.f32.mxu0 0.0
  %853 = vmatmul.mubr.f32.gmra.mrb[0].mxu0 %v310
  %v854 = vpop.f32.mrb[0].mxu0
  %v855 = vadd.f32 %v156, %v854
  %v856 = vpop.f32.mrb[0].mxu0
  %857 = vmatprep.mubr.f32.mxu0 0.0
  %858 = vmatmul.mubr.f32.gmra.mrb[0].mxu0 %v313
  %v859 = vpop.f32.mrb[0].mxu0
  %v860 = vadd.f32 %v156, %v859
  %v861 = vpop.f32.mrb[0].mxu0
  %862 = vmatprep.mubr.f32.mxu0 0.0
  %863 = vmatmul.mubr.f32.gmra.mrb[0].mxu0 %v316
  %v864 = vpop.f32.mrb[0].mxu0
  %v865 = vadd.f32 %v156, %v864
  %v866 = vpop.f32.mrb[0].mxu0
  %867 = vmatprep.mubr.f32.mxu0 0.0
  %868 = vmatmul.mubr.f32.gmra.mrb[0].mxu0 %v319
  %v869 = vpop.f32.mrb[0].mxu0
  %v870 = vadd.f32 %v156, %v869
  %v871 = vpop.f32.mrb[0].mxu0
  %872 = vmatprep.mubr.f32.mxu0 0.0
  %873 = vmatmul.mubr.f32.gmra.mrb[0].mxu0 %v322
  %v874 = vpop.f32.mrb[0].mxu0
  %v875 = vadd.f32 %v156, %v874
  %v876 = vpop.f32.mrb[0].mxu0
  %877 = vmatprep.mubr.f32.mxu0 0.0
  %878 = vmatmul.mubr.f32.gmra.mrb[0].mxu0 %v325
  %v879 = vpop.f32.mrb[0].mxu0
  %v880 = vadd.f32 %v156, %v879
  %v881 = vpop.f32.mrb[0].mxu0
  %882 = vmatprep.mubr.f32.mxu0 0.0
  %883 = vmatmul.mubr.f32.gmra.mrb[0].mxu0 %v328
  %v884 = vpop.f32.mrb[0].mxu0
  %v885 = vadd.f32 %v156, %v884
  %v886 = vpop.f32.mrb[0].mxu0
  %887 = vmatprep.mubr.f32.mxu0 0.0
  %888 = vmatmul.mubr.f32.gmra.mrb[0].mxu0 %v331
  %v889 = vpop.f32.mrb[0].mxu0
  %v890 = vadd.f32 %v156, %v889
  %v891 = vpop.f32.mrb[0].mxu0
  %892 = vmatprep.mubr.f32.mxu0 0.0
  %893 = vmatmul.mubr.f32.gmra.mrb[0].mxu0 %v334
  %v894 = vpop.f32.mrb[0].mxu0
  %v895 = vadd.f32 %v156, %v894
  %v896 = vpop.f32.mrb[0].mxu0
  %897 = vmatprep.mubr.f32.mxu0 0.0
  %898 = vmatmul.mubr.f32.gmra.mrb[0].mxu0 %v337
  %v899 = vpop.f32.mrb[0].mxu0
  %v900 = vadd.f32 %v156, %v899
  %v901 = vpop.f32.mrb[0].mxu0
  %902 = vmatprep.mubr.f32.mxu0 0.0
  %903 = vmatmul.mubr.f32.gmra.mrb[0].mxu0 %v340
  %v904 = vpop.f32.mrb[0].mxu0
  %v905 = vadd.f32 %v156, %v904
  %v906 = vpop.f32.mrb[0].mxu0
  %907 = vmatprep.mubr.f32.mxu0 0.0
  %908 = vmatmul.mubr.f32.gmra.mrb[0].mxu0 %v343
  %v909 = vpop.f32.mrb[0].mxu0
  %v910 = vadd.f32 %v156, %v909
  %v911 = vpop.f32.mrb[0].mxu0
  %912 = vmatprep.mubr.f32.mxu0 0.0
  %913 = vmatmul.mubr.f32.gmra.mrb[0].mxu0 %v346
  %v914 = vpop.f32.mrb[0].mxu0
  %v915 = vadd.f32 %v156, %v914
  %v916 = vpop.f32.mrb[0].mxu0
  %917 = vmatprep.mubr.f32.mxu0 0.0
  %918 = vmatmul.mubr.f32.gmra.mrb[0].mxu0 %v349
  %v919 = vpop.f32.mrb[0].mxu0
  %v920 = vadd.f32 %v156, %v919
  %v921 = vpop.f32.mrb[0].mxu0
  %922 = vmatprep.mubr.f32.mxu0 0.0
  %923 = vmatmul.mubr.f32.gmra.mrb[0].mxu0 %v352
  %v924 = vpop.f32.mrb[0].mxu0
  %v925 = vadd.f32 %v156, %v924
  %v926 = vpop.f32.mrb[0].mxu0
  %927 = vmatprep.mubr.f32.mxu0 0.0
  %928 = vmatmul.mubr.f32.gmra.mrb[0].mxu0 %v355
  %v929 = vpop.f32.mrb[0].mxu0
  %v930 = vadd.f32 %v156, %v929
  %v931 = vpop.f32.mrb[0].mxu0
  %932 = vmatprep.mubr.f32.mxu0 0.0
  %933 = vmatmul.mubr.f32.gmra.mrb[0].mxu0 %v358
  %v934 = vpop.f32.mrb[0].mxu0
  %v935 = vadd.f32 %v156, %v934
  %v936 = vpop.f32.mrb[0].mxu0
  %937 = vmatprep.mubr.f32.mxu0 0.0
  %938 = vmatmul.mubr.f32.gmra.mrb[0].mxu0 %v361
  %v939 = vpop.f32.mrb[0].mxu0
  %v940 = vadd.f32 %v156, %v939
  %v941 = vpop.f32.mrb[0].mxu0
  %942 = vmatprep.mubr.f32.mxu0 0.0
  %943 = vmatmul.mubr.f32.gmra.mrb[0].mxu0 %v364
  %v944 = vpop.f32.mrb[0].mxu0
  %v945 = vadd.f32 %v156, %v944
  %v946 = vpop.f32.mrb[0].mxu0
  %947 = vmatprep.mubr.f32.mxu0 0.0
  %948 = vmatmul.mubr.f32.gmra.mrb[0].mxu0 %v367
  %v949 = vpop.f32.mrb[0].mxu0
  %v950 = vadd.f32 %v156, %v949
  %v951 = vpop.f32.mrb[0].mxu0
  %952 = vmatprep.mubr.f32.mxu0 0.0
  %953 = vmatmul.mubr.f32.gmra.mrb[0].mxu0 %v370
  %v954 = vpop.f32.mrb[0].mxu0
  %v955 = vadd.f32 %v156, %v954
  %v956 = vpop.f32.mrb[0].mxu0
  %957 = vmatprep.mubr.f32.mxu0 0.0
  %958 = vmatmul.mubr.f32.gmra.mrb[0].mxu0 %v373
  %v959 = vpop.f32.mrb[0].mxu0
  %v960 = vadd.f32 %v156, %v959
  %v961 = vpop.f32.mrb[0].mxu0
  %962 = vmatprep.mubr.f32.mxu0 0.0
  %963 = vmatmul.mubr.f32.gmra.mrb[0].mxu0 %v376
  %v964 = vpop.f32.mrb[0].mxu0
  %v965 = vadd.f32 %v156, %v964
  %v966 = vpop.f32.mrb[0].mxu0
  %967 = vmatprep.mubr.f32.mxu0 0.0
  %968 = vmatmul.mubr.f32.gmra.mrb[0].mxu0 %v379
  %v969 = vpop.f32.mrb[0].mxu0
  %v970 = vadd.f32 %v156, %v969
  %v971 = vpop.f32.mrb[0].mxu0
  %972 = vmatprep.mubr.f32.mxu0 0.0
  %973 = vmatmul.mubr.f32.gmra.mrb[0].mxu0 %v382
  %v974 = vpop.f32.mrb[0].mxu0
  %v975 = vadd.f32 %v156, %v974
  %v976 = vpop.f32.mrb[0].mxu0
  %977 = vmatprep.mubr.f32.mxu0 0.0
  %978 = vmatmul.mubr.f32.gmra.mrb[0].mxu0 %v385
  %v979 = vpop.f32.mrb[0].mxu0
  %v980 = vadd.f32 %v156, %v979
  %v981 = vpop.f32.mrb[0].mxu0
  %982 = vmatprep.mubr.f32.mxu0 0.0
  %983 = vmatmul.mubr.f32.gmra.mrb[0].mxu0 %v388
  %v984 = vpop.f32.mrb[0].mxu0
  %v985 = vadd.f32 %v156, %v984
  %v986 = vpop.f32.mrb[0].mxu0
  %987 = vmatprep.mubr.f32.mxu0 0.0
  %988 = vmatmul.mubr.f32.gmra.mrb[0].mxu0 %v391
  %v989 = vpop.f32.mrb[0].mxu0
  %v990 = vadd.f32 %v156, %v989
  %v991 = vpop.f32.mrb[0].mxu0
  %992 = vmatprep.mubr.f32.mxu0 0.0
  %993 = vmatmul.mubr.f32.gmra.mrb[0].mxu0 %v394
  %v994 = vpop.f32.mrb[0].mxu0
  %v995 = vadd.f32 %v156, %v994
  %v996 = vpop.f32.mrb[0].mxu0
  %997 = vmatprep.mubr.f32.mxu0 0.0
  %998 = vmatmul.mubr.f32.gmra.mrb[0].mxu0 %v397
  %v999 = vpop.f32.mrb[0].mxu0
  %v1000 = vadd.f32 %v156, %v999
  %v1001 = vpop.f32.mrb[0].mxu0
  %1002 = vmatprep.mubr.f32.mxu0 0.0
  %1003 = vmatmul.mubr.f32.gmra.mrb[0].mxu0 %v400
  %v1004 = vpop.f32.mrb[0].mxu0
  %v1005 = vadd.f32 %v156, %v1004
  %v1006 = vpop.f32.mrb[0].mxu0
  %1007 = vmatprep.mubr.f32.mxu0 0.0
  %1008 = vmatmul.mubr.f32.gmra.mrb[0].mxu0 %v403
  %v1009 = vpop.f32.mrb[0].mxu0
  %v1010 = vadd.f32 %v156, %v1009
  %v1011 = vpop.f32.mrb[0].mxu0
  %1012 = vmatprep.mubr.f32.mxu0 0.0
  %1013 = vmatmul.mubr.f32.gmra.mrb[0].mxu0 %v406
  %v1014 = vpop.f32.mrb[0].mxu0
  %v1015 = vadd.f32 %v156, %v1014
  %v1016 = vpop.f32.mrb[0].mxu0
  %1017 = vmatprep.mubr.f32.mxu0 0.0
  %1018 = vmatmul.mubr.f32.gmra.mrb[0].mxu0 %v409
  %v1019 = vpop.f32.mrb[0].mxu0
  %v1020 = vadd.f32 %v156, %v1019
  %v1021 = vpop.f32.mrb[0].mxu0
  %1022 = vmatprep.mubr.f32.mxu0 0.0
  %1023 = vmatmul.mubr.f32.gmra.mrb[0].mxu0 %v412
  %v1024 = vpop.f32.mrb[0].mxu0
  %v1025 = vadd.f32 %v156, %v1024
  %v1026 = vpop.f32.mrb[0].mxu0
  %1027 = vmatprep.mubr.f32.mxu0 0.0
  %1028 = vmatmul.mubr.f32.gmra.mrb[0].mxu0 %v415
  %v1029 = vpop.f32.mrb[0].mxu0
  %v1030 = vadd.f32 %v156, %v1029
  %v1031 = vpop.f32.mrb[0].mxu0
  %1032 = vmatprep.mubr.f32.mxu0 0.0
  %1033 = vmatmul.mubr.f32.gmra.mrb[0].mxu0 %v418
  %v1034 = vpop.f32.mrb[0].mxu0
  %v1035 = vadd.f32 %v156, %v1034
  %v1036 = vpop.f32.mrb[0].mxu0
  %1037 = vmatprep.mubr.f32.mxu0 0.0
  %1038 = vmatmul.mubr.f32.gmra.mrb[0].mxu0 %v421
  %v1039 = vpop.f32.mrb[0].mxu0
  %v1040 = vadd.f32 %v156, %v1039
  %v1041 = vpop.f32.mrb[0].mxu0
  %1042 = vmatprep.mubr.f32.mxu0 0.0
  %1043 = vmatmul.mubr.f32.gmra.mrb[0].mxu0 %v424
  %v1044 = vpop.f32.mrb[0].mxu0
  %v1045 = vadd.f32 %v156, %v1044
  %v1046 = vpop.f32.mrb[0].mxu0
  %1047 = vmatprep.mubr.f32.mxu0 0.0
  %1048 = vmatmul.mubr.f32.gmra.mrb[0].mxu0 %v427
  %v1049 = vpop.f32.mrb[0].mxu0
  %v1050 = vadd.f32 %v156, %v1049
  %v1051 = vpop.f32.mrb[0].mxu0
  %1052 = vmatprep.mubr.f32.mxu0 0.0
  %1053 = vmatmul.mubr.f32.gmra.mrb[0].mxu0 %v430
  %v1054 = vpop.f32.mrb[0].mxu0
  %v1055 = vadd.f32 %v156, %v1054
  %v1056 = vpop.f32.mrb[0].mxu0
  %1057 = vmatprep.mubr.f32.mxu0 0.0
  %1058 = vmatmul.mubr.f32.gmra.mrb[0].mxu0 %v433
  %v1059 = vpop.f32.mrb[0].mxu0
  %v1060 = vadd.f32 %v156, %v1059
  %v1061 = vpop.f32.mrb[0].mxu0
  %1062 = vmatprep.mubr.f32.mxu0 0.0
  %1063 = vmatmul.mubr.f32.gmra.mrb[0].mxu0 %v436
  %v1064 = vpop.f32.mrb[0].mxu0
  %v1065 = vadd.f32 %v156, %v1064
  %v1066 = vpop.f32.mrb[0].mxu0
  %1067 = vmatprep.mubr.f32.mxu0 0.0
  %1068 = vmatmul.mubr.f32.gmra.mrb[0].mxu0 %v439
  %v1069 = vpop.f32.mrb[0].mxu0
  %v1070 = vadd.f32 %v156, %v1069
  %v1071 = vpop.f32.mrb[0].mxu0
  %1072 = vmatprep.mubr.f32.mxu0 0.0
  %1073 = vmatmul.mubr.f32.gmra.mrb[0].mxu0 %v442
  %v1074 = vpop.f32.mrb[0].mxu0
  %v1075 = vadd.f32 %v156, %v1074
  %v1076 = vpop.f32.mrb[0].mxu0
  %1077 = vmatprep.mubr.f32.mxu0 0.0
  %1078 = vmatmul.mubr.f32.gmra.mrb[0].mxu0 %v445
  %v1079 = vpop.f32.mrb[0].mxu0
  %v1080 = vadd.f32 %v156, %v1079
  %v1081 = vpop.f32.mrb[0].mxu0
  %1082 = vmatprep.mubr.f32.mxu0 0.0
  %1083 = vmatmul.mubr.f32.gmra.mrb[0].mxu0 %v448
  %v1084 = vpop.f32.mrb[0].mxu0
  %v1085 = vadd.f32 %v156, %v1084
  %v1086 = vpop.f32.mrb[0].mxu0
  %1087 = vmatprep.mubr.f32.mxu0 0.0
  %1088 = vmatmul.mubr.f32.gmra.mrb[0].mxu0 %v451
  %v1089 = vpop.f32.mrb[0].mxu0
  %v1090 = vadd.f32 %v156, %v1089
  %v1091 = vpop.f32.mrb[0].mxu0
  %1092 = vmatprep.mubr.f32.mxu0 0.0
  %1093 = vmatmul.mubr.f32.gmra.mrb[0].mxu0 %v454
  %v1094 = vpop.f32.mrb[0].mxu0
  %v1095 = vadd.f32 %v156, %v1094
  %v1096 = vpop.f32.mrb[0].mxu0
  %1097 = vmatprep.mubr.f32.mxu0 0.0
  %1098 = vmatmul.mubr.f32.gmra.mrb[0].mxu0 %v457
  %v1099 = vpop.f32.mrb[0].mxu0
  %v1100 = vadd.f32 %v156, %v1099
  %v1101 = vpop.f32.mrb[0].mxu0
  %1102 = vmatprep.mubr.f32.mxu0 0.0
  %1103 = vmatmul.mubr.f32.gmra.mrb[0].mxu0 %v460
  %v1104 = vpop.f32.mrb[0].mxu0
  %v1105 = vadd.f32 %v156, %v1104
  %v1106 = vpop.f32.mrb[0].mxu0
  %1107 = vmatprep.mubr.f32.mxu0 0.0
  %1108 = vmatmul.mubr.f32.gmra.mrb[0].mxu0 %v463
  %v1109 = vpop.f32.mrb[0].mxu0
  %v1110 = vadd.f32 %v156, %v1109
  %v1111 = vpop.f32.mrb[0].mxu0
  %1112 = vmatprep.mubr.f32.mxu0 0.0
  %1113 = vmatmul.mubr.f32.gmra.mrb[0].mxu0 %v466
  %v1114 = vpop.f32.mrb[0].mxu0
  %v1115 = vadd.f32 %v156, %v1114
  %v1116 = vpop.f32.mrb[0].mxu0
  %1117 = vmatprep.mubr.f32.mxu0 0.0
  %1118 = vmatmul.mubr.f32.gmra.mrb[0].mxu0 %v469
  %v1119 = vpop.f32.mrb[0].mxu0
  %v1120 = vadd.f32 %v156, %v1119
  %v1121 = vpop.f32.mrb[0].mxu0
  %1122 = vmatprep.mubr.f32.mxu0 0.0
  %1123 = vmatmul.mubr.f32.gmra.mrb[0].mxu0 %v472
  %v1124 = vpop.f32.mrb[0].mxu0
  %v1125 = vadd.f32 %v156, %v1124
  %v1126 = vpop.f32.mrb[0].mxu0
  %1127 = vmatprep.mubr.f32.mxu0 0.0
  %1128 = vmatmul.mubr.f32.gmra.mrb[0].mxu0 %v475
  %v1129 = vpop.f32.mrb[0].mxu0
  %v1130 = vadd.f32 %v156, %v1129
  %v1131 = vpop.f32.mrb[0].mxu0
  %1132 = vmatprep.mubr.f32.mxu0 0.0
  %1133 = vmatmul.mubr.f32.gmra.mrb[0].mxu0 %v478
  %v1134 = vpop.f32.mrb[0].mxu0
  %v1135 = vadd.f32 %v156, %v1134
  %v1136 = vpop.f32.mrb[0].mxu0
  %1137 = vmatprep.mubr.f32.mxu0 0.0
  %1138 = vmatmul.mubr.f32.gmra.mrb[0].mxu0 %v481
  %v1139 = vpop.f32.mrb[0].mxu0
  %v1140 = vadd.f32 %v156, %v1139
  %v1141 = vpop.f32.mrb[0].mxu0
  %1142 = vmatprep.mubr.f32.mxu0 0.0
  %1143 = vmatmul.mubr.f32.gmra.mrb[0].mxu0 %v484
  %v1144 = vpop.f32.mrb[0].mxu0
  %v1145 = vadd.f32 %v156, %v1144
  %v1146 = vpop.f32.mrb[0].mxu0
  %1147 = vmatprep.mubr.f32.mxu0 0.0
  %1148 = vmatmul.mubr.f32.gmra.mrb[0].mxu0 %v487
  %v1149 = vpop.f32.mrb[0].mxu0
  %v1150 = vadd.f32 %v156, %v1149
  %v1151 = vpop.f32.mrb[0].mxu0
  %1152 = vmatprep.mubr.f32.mxu0 0.0
  %1153 = vmatmul.mubr.f32.gmra.mrb[0].mxu0 %v490
  %v1154 = vpop.f32.mrb[0].mxu0
  %v1155 = vadd.f32 %v156, %v1154
  %v1156 = vpop.f32.mrb[0].mxu0
  %1157 = vmatprep.mubr.f32.mxu0 0.0
  %1158 = vmatmul.mubr.f32.gmra.mrb[0].mxu0 %v493
  %v1159 = vpop.f32.mrb[0].mxu0
  %v1160 = vadd.f32 %v156, %v1159
  %v1161 = vpop.f32.mrb[0].mxu0
  %1162 = vmatprep.mubr.f32.mxu0 0.0
  %1163 = vmatmul.mubr.f32.gmra.mrb[0].mxu0 %v496
  %v1164 = vpop.f32.mrb[0].mxu0
  %v1165 = vadd.f32 %v156, %v1164
  %v1166 = vpop.f32.mrb[0].mxu0
  %1167 = vmatprep.mubr.f32.mxu0 0.0
  %1168 = vmatmul.mubr.f32.gmra.mrb[0].mxu0 %v499
  %v1169 = vpop.f32.mrb[0].mxu0
  %v1170 = vadd.f32 %v156, %v1169
  %v1171 = vpop.f32.mrb[0].mxu0
  %1172 = vmatprep.mubr.f32.mxu0 0.0
  %1173 = vmatmul.mubr.f32.gmra.mrb[0].mxu0 %v502
  %v1174 = vpop.f32.mrb[0].mxu0
  %v1175 = vadd.f32 %v156, %v1174
  %v1176 = vpop.f32.mrb[0].mxu0
  %1177 = vmatprep.mubr.f32.mxu0 0.0
  %1178 = vmatmul.mubr.f32.gmra.mrb[0].mxu0 %v505
  %v1179 = vpop.f32.mrb[0].mxu0
  %v1180 = vadd.f32 %v156, %v1179
  %v1181 = vpop.f32.mrb[0].mxu0
  %1182 = vmatprep.mubr.f32.mxu0 0.0
  %1183 = vmatmul.mubr.f32.gmra.mrb[0].mxu0 %v508
  %v1184 = vpop.f32.mrb[0].mxu0
  %v1185 = vadd.f32 %v156, %v1184
  %v1186 = vpop.f32.mrb[0].mxu0
  %1187 = vmatprep.mubr.f32.mxu0 0.0
  %1188 = vmatmul.mubr.f32.gmra.mrb[0].mxu0 %v511
  %v1189 = vpop.f32.mrb[0].mxu0
  %v1190 = vadd.f32 %v156, %v1189
  %v1191 = vpop.f32.mrb[0].mxu0
  %1192 = vmatprep.mubr.f32.mxu0 0.0
  %1193 = vmatmul.mubr.f32.gmra.mrb[0].mxu0 %v514
  %v1194 = vpop.f32.mrb[0].mxu0
  %v1195 = vadd.f32 %v156, %v1194
  %v1196 = vpop.f32.mrb[0].mxu0
  %1197 = vmatprep.mubr.f32.mxu0 0.0
  %1198 = vmatmul.mubr.f32.gmra.mrb[0].mxu0 %v517
  %v1199 = vpop.f32.mrb[0].mxu0
  %v1200 = vadd.f32 %v156, %v1199
  %v1201 = vpop.f32.mrb[0].mxu0
  %1202 = vmatprep.mubr.f32.mxu0 0.0
  %1203 = vmatmul.mubr.f32.gmra.mrb[0].mxu0 %v520
  %v1204 = vpop.f32.mrb[0].mxu0
  %v1205 = vadd.f32 %v156, %v1204
  %v1206 = vpop.f32.mrb[0].mxu0
  %1207 = vmatprep.mubr.f32.mxu0 0.0
  %1208 = vmatmul.mubr.f32.gmra.mrb[0].mxu0 %v523
  %v1209 = vpop.f32.mrb[0].mxu0
  %v1210 = vadd.f32 %v156, %v1209
  %v1211 = vpop.f32.mrb[0].mxu0
  %1212 = vmatprep.mubr.f32.mxu0 0.0
  %1213 = vmatmul.mubr.f32.gmra.mrb[0].mxu0 %v526
  %v1214 = vpop.f32.mrb[0].mxu0
  %v1215 = vadd.f32 %v156, %v1214
  %v1216 = vpop.f32.mrb[0].mxu0
  %1217 = vmatprep.mubr.f32.mxu0 0.0
  %1218 = vmatmul.mubr.f32.gmra.mrb[0].mxu0 %v529
  %v1219 = vpop.f32.mrb[0].mxu0
  %v1220 = vadd.f32 %v156, %v1219
  %v1221 = vpop.f32.mrb[0].mxu0
  %1222 = vmatprep.mubr.f32.mxu0 0.0
  %1223 = vmatmul.mubr.f32.gmra.mrb[0].mxu0 %v532
  %v1224 = vpop.f32.mrb[0].mxu0
  %v1225 = vadd.f32 %v156, %v1224
  %v1226 = vpop.f32.mrb[0].mxu0
  %1227 = vdwg.mxu0
  %v1228 = vmax.f32 %v605, 0.0
  %v1229 = vmax.f32 %v610, 0.0
  %v1230 = vmax.f32 %v615, 0.0
  %v1231 = vmax.f32 %v620, 0.0
  %v1232 = vmax.f32 %v625, 0.0
  %v1233 = vmax.f32 %v630, 0.0
  %v1234 = vmax.f32 %v635, 0.0
  %v1235 = vmax.f32 %v640, 0.0
  %v1236 = vmax.f32 %v645, 0.0
  %v1237 = vmax.f32 %v650, 0.0
  %v1238 = vmax.f32 %v655, 0.0
  %v1239 = vmax.f32 %v660, 0.0
  %v1240 = vmax.f32 %v665, 0.0
  %v1241 = vmax.f32 %v670, 0.0
  %v1242 = vmax.f32 %v675, 0.0
  %v1243 = vmax.f32 %v680, 0.0
  %v1244 = vmax.f32 %v685, 0.0
  %v1245 = vmax.f32 %v690, 0.0
  %v1246 = vmax.f32 %v695, 0.0
  %v1247 = vmax.f32 %v700, 0.0
  %v1248 = vmax.f32 %v705, 0.0
  %v1249 = vmax.f32 %v710, 0.0
  %v1250 = vmax.f32 %v715, 0.0
  %v1251 = vmax.f32 %v720, 0.0
  %v1252 = vmax.f32 %v725, 0.0
  %v1253 = vmax.f32 %v730, 0.0
  %v1254 = vmax.f32 %v735, 0.0
  %v1255 = vmax.f32 %v740, 0.0
  %v1256 = vmax.f32 %v745, 0.0
  %v1257 = vmax.f32 %v750, 0.0
  %v1258 = vmax.f32 %v755, 0.0
  %v1259 = vmax.f32 %v760, 0.0
  %v1260 = vmax.f32 %v765, 0.0
  %v1261 = vmax.f32 %v770, 0.0
  %v1262 = vmax.f32 %v775, 0.0
  %v1263 = vmax.f32 %v780, 0.0
  %v1264 = vmax.f32 %v785, 0.0
  %v1265 = vmax.f32 %v790, 0.0
  %v1266 = vmax.f32 %v795, 0.0
  %v1267 = vmax.f32 %v800, 0.0
  %v1268 = vmax.f32 %v805, 0.0
  %v1269 = vmax.f32 %v810, 0.0
  %v1270 = vmax.f32 %v815, 0.0
  %v1271 = vmax.f32 %v820, 0.0
  %v1272 = vmax.f32 %v825, 0.0
  %v1273 = vmax.f32 %v830, 0.0
  %v1274 = vmax.f32 %v835, 0.0
  %v1275 = vmax.f32 %v840, 0.0
  %v1276 = vmax.f32 %v845, 0.0
  %v1277 = vmax.f32 %v850, 0.0
  %v1278 = vmax.f32 %v855, 0.0
  %v1279 = vmax.f32 %v860, 0.0
  %v1280 = vmax.f32 %v865, 0.0
  %v1281 = vmax.f32 %v870, 0.0
  %v1282 = vmax.f32 %v875, 0.0
  %v1283 = vmax.f32 %v880, 0.0
  %v1284 = vmax.f32 %v885, 0.0
  %v1285 = vmax.f32 %v890, 0.0
  %v1286 = vmax.f32 %v895, 0.0
  %v1287 = vmax.f32 %v900, 0.0
  %v1288 = vmax.f32 %v905, 0.0
  %v1289 = vmax.f32 %v910, 0.0
  %v1290 = vmax.f32 %v915, 0.0
  %v1291 = vmax.f32 %v920, 0.0
  %v1292 = vmax.f32 %v925, 0.0
  %v1293 = vmax.f32 %v930, 0.0
  %v1294 = vmax.f32 %v935, 0.0
  %v1295 = vmax.f32 %v940, 0.0
  %v1296 = vmax.f32 %v945, 0.0
  %v1297 = vmax.f32 %v950, 0.0
  %v1298 = vmax.f32 %v955, 0.0
  %v1299 = vmax.f32 %v960, 0.0
  %v1300 = vmax.f32 %v965, 0.0
  %v1301 = vmax.f32 %v970, 0.0
  %v1302 = vmax.f32 %v975, 0.0
  %v1303 = vmax.f32 %v980, 0.0
  %v1304 = vmax.f32 %v985, 0.0
  %v1305 = vmax.f32 %v990, 0.0
  %v1306 = vmax.f32 %v995, 0.0
  %v1307 = vmax.f32 %v1000, 0.0
  %v1308 = vmax.f32 %v1005, 0.0
  %v1309 = vmax.f32 %v1010, 0.0
  %v1310 = vmax.f32 %v1015, 0.0
  %v1311 = vmax.f32 %v1020, 0.0
  %v1312 = vmax.f32 %v1025, 0.0
  %v1313 = vmax.f32 %v1030, 0.0
  %v1314 = vmax.f32 %v1035, 0.0
  %v1315 = vmax.f32 %v1040, 0.0
  %v1316 = vmax.f32 %v1045, 0.0
  %v1317 = vmax.f32 %v1050, 0.0
  %v1318 = vmax.f32 %v1055, 0.0
  %v1319 = vmax.f32 %v1060, 0.0
  %v1320 = vmax.f32 %v1065, 0.0
  %v1321 = vmax.f32 %v1070, 0.0
  %v1322 = vmax.f32 %v1075, 0.0
  %v1323 = vmax.f32 %v1080, 0.0
  %v1324 = vmax.f32 %v1085, 0.0
  %v1325 = vmax.f32 %v1090, 0.0
  %v1326 = vmax.f32 %v1095, 0.0
  %v1327 = vmax.f32 %v1100, 0.0
  %v1328 = vmax.f32 %v1105, 0.0
  %v1329 = vmax.f32 %v1110, 0.0
  %v1330 = vmax.f32 %v1115, 0.0
  %v1331 = vmax.f32 %v1120, 0.0
  %v1332 = vmax.f32 %v1125, 0.0
  %v1333 = vmax.f32 %v1130, 0.0
  %v1334 = vmax.f32 %v1135, 0.0
  %v1335 = vmax.f32 %v1140, 0.0
  %v1336 = vmax.f32 %v1145, 0.0
  %v1337 = vmax.f32 %v1150, 0.0
  %v1338 = vmax.f32 %v1155, 0.0
  %v1339 = vmax.f32 %v1160, 0.0
  %v1340 = vmax.f32 %v1165, 0.0
  %v1341 = vmax.f32 %v1170, 0.0
  %v1342 = vmax.f32 %v1175, 0.0
  %v1343 = vmax.f32 %v1180, 0.0
  %v1344 = vmax.f32 %v1185, 0.0
  %v1345 = vmax.f32 %v1190, 0.0
  %v1346 = vmax.f32 %v1195, 0.0
  %v1347 = vmax.f32 %v1200, 0.0
  %v1348 = vmax.f32 %v1205, 0.0
  %v1349 = vmax.f32 %v1210, 0.0
  %v1350 = vmax.f32 %v1215, 0.0
  %v1351 = vmax.f32 %v1220, 0.0
  %v1352 = vmax.f32 %v1225, 0.0
  %v1353 = vld [vmem:[%s3] sm:$0x1]
  %v1355 = vlaneseq
  %v1356 = vshrl.u32 %v1355, 7
  %v1357 = vsub.s32 0, %v1356
  %v1358 = vrot.slane %v1353, %v1357
  %v1360 = vmul.f32 %v1228, %v1358
  %v1361 = vmul.f32 %v1229, %v1358
  %v1362 = vmul.f32 %v1230, %v1358
  %v1363 = vmul.f32 %v1231, %v1358
  %v1364 = vmul.f32 %v1232, %v1358
  %v1365 = vmul.f32 %v1233, %v1358
  %v1366 = vmul.f32 %v1234, %v1358
  %v1367 = vmul.f32 %v1235, %v1358
  %v1368 = vmul.f32 %v1236, %v1358
  %v1369 = vmul.f32 %v1237, %v1358
  %v1370 = vmul.f32 %v1238, %v1358
  %v1371 = vmul.f32 %v1239, %v1358
  %v1372 = vmul.f32 %v1240, %v1358
  %v1373 = vmul.f32 %v1241, %v1358
  %v1374 = vmul.f32 %v1242, %v1358
  %v1375 = vmul.f32 %v1243, %v1358
  %v1376 = vmul.f32 %v1244, %v1358
  %v1377 = vmul.f32 %v1245, %v1358
  %v1378 = vmul.f32 %v1246, %v1358
  %v1379 = vmul.f32 %v1247, %v1358
  %v1380 = vmul.f32 %v1248, %v1358
  %v1381 = vmul.f32 %v1249, %v1358
  %v1382 = vmul.f32 %v1250, %v1358
  %v1383 = vmul.f32 %v1251, %v1358
  %v1384 = vmul.f32 %v1252, %v1358
  %v1385 = vmul.f32 %v1253, %v1358
  %v1386 = vmul.f32 %v1254, %v1358
  %v1387 = vmul.f32 %v1255, %v1358
  %v1388 = vmul.f32 %v1256, %v1358
  %v1389 = vmul.f32 %v1257, %v1358
  %v1390 = vmul.f32 %v1258, %v1358
  %v1391 = vmul.f32 %v1259, %v1358
  %v1392 = vmul.f32 %v1260, %v1358
  %v1393 = vmul.f32 %v1261, %v1358
  %v1394 = vmul.f32 %v1262, %v1358
  %v1395 = vmul.f32 %v1263, %v1358
  %v1396 = vmul.f32 %v1264, %v1358
  %v1397 = vmul.f32 %v1265, %v1358
  %v1398 = vmul.f32 %v1266, %v1358
  %v1399 = vmul.f32 %v1267, %v1358
  %v1400 = vmul.f32 %v1268, %v1358
  %v1401 = vmul.f32 %v1269, %v1358
  %v1402 = vmul.f32 %v1270, %v1358
  %v1403 = vmul.f32 %v1271, %v1358
  %v1404 = vmul.f32 %v1272, %v1358
  %v1405 = vmul.f32 %v1273, %v1358
  %v1406 = vmul.f32 %v1274, %v1358
  %v1407 = vmul.f32 %v1275, %v1358
  %v1408 = vmul.f32 %v1276, %v1358
  %v1409 = vmul.f32 %v1277, %v1358
  %v1410 = vmul.f32 %v1278, %v1358
  %v1411 = vmul.f32 %v1279, %v1358
  %v1412 = vmul.f32 %v1280, %v1358
  %v1413 = vmul.f32 %v1281, %v1358
  %v1414 = vmul.f32 %v1282, %v1358
  %v1415 = vmul.f32 %v1283, %v1358
  %v1416 = vmul.f32 %v1284, %v1358
  %v1417 = vmul.f32 %v1285, %v1358
  %v1418 = vmul.f32 %v1286, %v1358
  %v1419 = vmul.f32 %v1287, %v1358
  %v1420 = vmul.f32 %v1288, %v1358
  %v1421 = vmul.f32 %v1289, %v1358
  %v1422 = vmul.f32 %v1290, %v1358
  %v1423 = vmul.f32 %v1291, %v1358
  %v1424 = vmul.f32 %v1292, %v1358
  %v1425 = vmul.f32 %v1293, %v1358
  %v1426 = vmul.f32 %v1294, %v1358
  %v1427 = vmul.f32 %v1295, %v1358
  %v1428 = vmul.f32 %v1296, %v1358
  %v1429 = vmul.f32 %v1297, %v1358
  %v1430 = vmul.f32 %v1298, %v1358
  %v1431 = vmul.f32 %v1299, %v1358
  %v1432 = vmul.f32 %v1300, %v1358
  %v1433 = vmul.f32 %v1301, %v1358
  %v1434 = vmul.f32 %v1302, %v1358
  %v1435 = vmul.f32 %v1303, %v1358
  %v1436 = vmul.f32 %v1304, %v1358
  %v1437 = vmul.f32 %v1305, %v1358
  %v1438 = vmul.f32 %v1306, %v1358
  %v1439 = vmul.f32 %v1307, %v1358
  %v1440 = vmul.f32 %v1308, %v1358
  %v1441 = vmul.f32 %v1309, %v1358
  %v1442 = vmul.f32 %v1310, %v1358
  %v1443 = vmul.f32 %v1311, %v1358
  %v1444 = vmul.f32 %v1312, %v1358
  %v1445 = vmul.f32 %v1313, %v1358
  %v1446 = vmul.f32 %v1314, %v1358
  %v1447 = vmul.f32 %v1315, %v1358
  %v1448 = vmul.f32 %v1316, %v1358
  %v1449 = vmul.f32 %v1317, %v1358
  %v1450 = vmul.f32 %v1318, %v1358
  %v1451 = vmul.f32 %v1319, %v1358
  %v1452 = vmul.f32 %v1320, %v1358
  %v1453 = vmul.f32 %v1321, %v1358
  %v1454 = vmul.f32 %v1322, %v1358
  %v1455 = vmul.f32 %v1323, %v1358
  %v1456 = vmul.f32 %v1324, %v1358
  %v1457 = vmul.f32 %v1325, %v1358
  %v1458 = vmul.f32 %v1326, %v1358
  %v1459 = vmul.f32 %v1327, %v1358
  %v1460 = vmul.f32 %v1328, %v1358
  %v1461 = vmul.f32 %v1329, %v1358
  %v1462 = vmul.f32 %v1330, %v1358
  %v1463 = vmul.f32 %v1331, %v1358
  %v1464 = vmul.f32 %v1332, %v1358
  %v1465 = vmul.f32 %v1333, %v1358
  %v1466 = vmul.f32 %v1334, %v1358
  %v1467 = vmul.f32 %v1335, %v1358
  %v1468 = vmul.f32 %v1336, %v1358
  %v1469 = vmul.f32 %v1337, %v1358
  %v1470 = vmul.f32 %v1338, %v1358
  %v1471 = vmul.f32 %v1339, %v1358
  %v1472 = vmul.f32 %v1340, %v1358
  %v1473 = vmul.f32 %v1341, %v1358
  %v1474 = vmul.f32 %v1342, %v1358
  %v1475 = vmul.f32 %v1343, %v1358
  %v1476 = vmul.f32 %v1344, %v1358
  %v1477 = vmul.f32 %v1345, %v1358
  %v1478 = vmul.f32 %v1346, %v1358
  %v1479 = vmul.f32 %v1347, %v1358
  %v1480 = vmul.f32 %v1348, %v1358
  %v1481 = vmul.f32 %v1349, %v1358
  %v1482 = vmul.f32 %v1350, %v1358
  %v1483 = vmul.f32 %v1351, %v1358
  %v1484 = vmul.f32 %v1352, %v1358
  %vm1485 = vcmask 130048
  %v1486 = vsel %vm1485, %v1360, 0.0
  %1487 = vadd.xlane.f32.xlu0 %v1486
  %v1488 = vpop.xlane.xlu0 %1487
  %v1489 = vsel %vm1485, %v1361, 0.0
  %1490 = vadd.xlane.f32.xlu0 %v1489
  %v1491 = vpop.xlane.xlu0 %1490
  %v1492 = vsel %vm1485, %v1362, 0.0
  %1493 = vadd.xlane.f32.xlu0 %v1492
  %v1494 = vpop.xlane.xlu0 %1493
  %v1495 = vsel %vm1485, %v1363, 0.0
  %1496 = vadd.xlane.f32.xlu0 %v1495
  %v1497 = vpop.xlane.xlu0 %1496
  %v1498 = vsel %vm1485, %v1364, 0.0
  %1499 = vadd.xlane.f32.xlu0 %v1498
  %v1500 = vpop.xlane.xlu0 %1499
  %v1501 = vsel %vm1485, %v1365, 0.0
  %1502 = vadd.xlane.f32.xlu0 %v1501
  %v1503 = vpop.xlane.xlu0 %1502
  %v1504 = vsel %vm1485, %v1366, 0.0
  %1505 = vadd.xlane.f32.xlu0 %v1504
  %v1506 = vpop.xlane.xlu0 %1505
  %v1507 = vsel %vm1485, %v1367, 0.0
  %1508 = vadd.xlane.f32.xlu0 %v1507
  %v1509 = vpop.xlane.xlu0 %1508
  %v1510 = vsel %vm1485, %v1368, 0.0
  %1511 = vadd.xlane.f32.xlu0 %v1510
  %v1512 = vpop.xlane.xlu0 %1511
  %v1513 = vsel %vm1485, %v1369, 0.0
  %1514 = vadd.xlane.f32.xlu0 %v1513
  %v1515 = vpop.xlane.xlu0 %1514
  %v1516 = vsel %vm1485, %v1370, 0.0
  %1517 = vadd.xlane.f32.xlu0 %v1516
  %v1518 = vpop.xlane.xlu0 %1517
  %v1519 = vsel %vm1485, %v1371, 0.0
  %1520 = vadd.xlane.f32.xlu0 %v1519
  %v1521 = vpop.xlane.xlu0 %1520
  %v1522 = vsel %vm1485, %v1372, 0.0
  %1523 = vadd.xlane.f32.xlu0 %v1522
  %v1524 = vpop.xlane.xlu0 %1523
  %v1525 = vsel %vm1485, %v1373, 0.0
  %1526 = vadd.xlane.f32.xlu0 %v1525
  %v1527 = vpop.xlane.xlu0 %1526
  %v1528 = vsel %vm1485, %v1374, 0.0
  %1529 = vadd.xlane.f32.xlu0 %v1528
  %v1530 = vpop.xlane.xlu0 %1529
  %v1531 = vsel %vm1485, %v1375, 0.0
  %1532 = vadd.xlane.f32.xlu0 %v1531
  %v1533 = vpop.xlane.xlu0 %1532
  %v1534 = vsel %vm1485, %v1376, 0.0
  %1535 = vadd.xlane.f32.xlu0 %v1534
  %v1536 = vpop.xlane.xlu0 %1535
  %v1537 = vsel %vm1485, %v1377, 0.0
  %1538 = vadd.xlane.f32.xlu0 %v1537
  %v1539 = vpop.xlane.xlu0 %1538
  %v1540 = vsel %vm1485, %v1378, 0.0
  %1541 = vadd.xlane.f32.xlu0 %v1540
  %v1542 = vpop.xlane.xlu0 %1541
  %v1543 = vsel %vm1485, %v1379, 0.0
  %1544 = vadd.xlane.f32.xlu0 %v1543
  %v1545 = vpop.xlane.xlu0 %1544
  %v1546 = vsel %vm1485, %v1380, 0.0
  %1547 = vadd.xlane.f32.xlu0 %v1546
  %v1548 = vpop.xlane.xlu0 %1547
  %v1549 = vsel %vm1485, %v1381, 0.0
  %1550 = vadd.xlane.f32.xlu0 %v1549
  %v1551 = vpop.xlane.xlu0 %1550
  %v1552 = vsel %vm1485, %v1382, 0.0
  %1553 = vadd.xlane.f32.xlu0 %v1552
  %v1554 = vpop.xlane.xlu0 %1553
  %v1555 = vsel %vm1485, %v1383, 0.0
  %1556 = vadd.xlane.f32.xlu0 %v1555
  %v1557 = vpop.xlane.xlu0 %1556
  %v1558 = vsel %vm1485, %v1384, 0.0
  %1559 = vadd.xlane.f32.xlu0 %v1558
  %v1560 = vpop.xlane.xlu0 %1559
  %v1561 = vsel %vm1485, %v1385, 0.0
  %1562 = vadd.xlane.f32.xlu0 %v1561
  %v1563 = vpop.xlane.xlu0 %1562
  %v1564 = vsel %vm1485, %v1386, 0.0
  %1565 = vadd.xlane.f32.xlu0 %v1564
  %v1566 = vpop.xlane.xlu0 %1565
  %v1567 = vsel %vm1485, %v1387, 0.0
  %1568 = vadd.xlane.f32.xlu0 %v1567
  %v1569 = vpop.xlane.xlu0 %1568
  %v1570 = vsel %vm1485, %v1388, 0.0
  %1571 = vadd.xlane.f32.xlu0 %v1570
  %v1572 = vpop.xlane.xlu0 %1571
  %v1573 = vsel %vm1485, %v1389, 0.0
  %1574 = vadd.xlane.f32.xlu0 %v1573
  %v1575 = vpop.xlane.xlu0 %1574
  %v1576 = vsel %vm1485, %v1390, 0.0
  %1577 = vadd.xlane.f32.xlu0 %v1576
  %v1578 = vpop.xlane.xlu0 %1577
  %v1579 = vsel %vm1485, %v1391, 0.0
  %1580 = vadd.xlane.f32.xlu0 %v1579
  %v1581 = vpop.xlane.xlu0 %1580
  %v1582 = vsel %vm1485, %v1392, 0.0
  %1583 = vadd.xlane.f32.xlu0 %v1582
  %v1584 = vpop.xlane.xlu0 %1583
  %v1585 = vsel %vm1485, %v1393, 0.0
  %1586 = vadd.xlane.f32.xlu0 %v1585
  %v1587 = vpop.xlane.xlu0 %1586
  %v1588 = vsel %vm1485, %v1394, 0.0
  %1589 = vadd.xlane.f32.xlu0 %v1588
  %v1590 = vpop.xlane.xlu0 %1589
  %v1591 = vsel %vm1485, %v1395, 0.0
  %1592 = vadd.xlane.f32.xlu0 %v1591
  %v1593 = vpop.xlane.xlu0 %1592
  %v1594 = vsel %vm1485, %v1396, 0.0
  %1595 = vadd.xlane.f32.xlu0 %v1594
  %v1596 = vpop.xlane.xlu0 %1595
  %v1597 = vsel %vm1485, %v1397, 0.0
  %1598 = vadd.xlane.f32.xlu0 %v1597
  %v1599 = vpop.xlane.xlu0 %1598
  %v1600 = vsel %vm1485, %v1398, 0.0
  %1601 = vadd.xlane.f32.xlu0 %v1600
  %v1602 = vpop.xlane.xlu0 %1601
  %v1603 = vsel %vm1485, %v1399, 0.0
  %1604 = vadd.xlane.f32.xlu0 %v1603
  %v1605 = vpop.xlane.xlu0 %1604
  %v1606 = vsel %vm1485, %v1400, 0.0
  %1607 = vadd.xlane.f32.xlu0 %v1606
  %v1608 = vpop.xlane.xlu0 %1607
  %v1609 = vsel %vm1485, %v1401, 0.0
  %1610 = vadd.xlane.f32.xlu0 %v1609
  %v1611 = vpop.xlane.xlu0 %1610
  %v1612 = vsel %vm1485, %v1402, 0.0
  %1613 = vadd.xlane.f32.xlu0 %v1612
  %v1614 = vpop.xlane.xlu0 %1613
  %v1615 = vsel %vm1485, %v1403, 0.0
  %1616 = vadd.xlane.f32.xlu0 %v1615
  %v1617 = vpop.xlane.xlu0 %1616
  %v1618 = vsel %vm1485, %v1404, 0.0
  %1619 = vadd.xlane.f32.xlu0 %v1618
  %v1620 = vpop.xlane.xlu0 %1619
  %v1621 = vsel %vm1485, %v1405, 0.0
  %1622 = vadd.xlane.f32.xlu0 %v1621
  %v1623 = vpop.xlane.xlu0 %1622
  %v1624 = vsel %vm1485, %v1406, 0.0
  %1625 = vadd.xlane.f32.xlu0 %v1624
  %v1626 = vpop.xlane.xlu0 %1625
  %v1627 = vsel %vm1485, %v1407, 0.0
  %1628 = vadd.xlane.f32.xlu0 %v1627
  %v1629 = vpop.xlane.xlu0 %1628
  %v1630 = vsel %vm1485, %v1408, 0.0
  %1631 = vadd.xlane.f32.xlu0 %v1630
  %v1632 = vpop.xlane.xlu0 %1631
  %v1633 = vsel %vm1485, %v1409, 0.0
  %1634 = vadd.xlane.f32.xlu0 %v1633
  %v1635 = vpop.xlane.xlu0 %1634
  %v1636 = vsel %vm1485, %v1410, 0.0
  %1637 = vadd.xlane.f32.xlu0 %v1636
  %v1638 = vpop.xlane.xlu0 %1637
  %v1639 = vsel %vm1485, %v1411, 0.0
  %1640 = vadd.xlane.f32.xlu0 %v1639
  %v1641 = vpop.xlane.xlu0 %1640
  %v1642 = vsel %vm1485, %v1412, 0.0
  %1643 = vadd.xlane.f32.xlu0 %v1642
  %v1644 = vpop.xlane.xlu0 %1643
  %v1645 = vsel %vm1485, %v1413, 0.0
  %1646 = vadd.xlane.f32.xlu0 %v1645
  %v1647 = vpop.xlane.xlu0 %1646
  %v1648 = vsel %vm1485, %v1414, 0.0
  %1649 = vadd.xlane.f32.xlu0 %v1648
  %v1650 = vpop.xlane.xlu0 %1649
  %v1651 = vsel %vm1485, %v1415, 0.0
  %1652 = vadd.xlane.f32.xlu0 %v1651
  %v1653 = vpop.xlane.xlu0 %1652
  %v1654 = vsel %vm1485, %v1416, 0.0
  %1655 = vadd.xlane.f32.xlu0 %v1654
  %v1656 = vpop.xlane.xlu0 %1655
  %v1657 = vsel %vm1485, %v1417, 0.0
  %1658 = vadd.xlane.f32.xlu0 %v1657
  %v1659 = vpop.xlane.xlu0 %1658
  %v1660 = vsel %vm1485, %v1418, 0.0
  %1661 = vadd.xlane.f32.xlu0 %v1660
  %v1662 = vpop.xlane.xlu0 %1661
  %v1663 = vsel %vm1485, %v1419, 0.0
  %1664 = vadd.xlane.f32.xlu0 %v1663
  %v1665 = vpop.xlane.xlu0 %1664
  %v1666 = vsel %vm1485, %v1420, 0.0
  %1667 = vadd.xlane.f32.xlu0 %v1666
  %v1668 = vpop.xlane.xlu0 %1667
  %v1669 = vsel %vm1485, %v1421, 0.0
  %1670 = vadd.xlane.f32.xlu0 %v1669
  %v1671 = vpop.xlane.xlu0 %1670
  %v1672 = vsel %vm1485, %v1422, 0.0
  %1673 = vadd.xlane.f32.xlu0 %v1672
  %v1674 = vpop.xlane.xlu0 %1673
  %v1675 = vsel %vm1485, %v1423, 0.0
  %1676 = vadd.xlane.f32.xlu0 %v1675
  %v1677 = vpop.xlane.xlu0 %1676
  %v1678 = vsel %vm1485, %v1424, 0.0
  %1679 = vadd.xlane.f32.xlu0 %v1678
  %v1680 = vpop.xlane.xlu0 %1679
  %v1681 = vsel %vm1485, %v1425, 0.0
  %1682 = vadd.xlane.f32.xlu0 %v1681
  %v1683 = vpop.xlane.xlu0 %1682
  %v1684 = vsel %vm1485, %v1426, 0.0
  %1685 = vadd.xlane.f32.xlu0 %v1684
  %v1686 = vpop.xlane.xlu0 %1685
  %v1687 = vsel %vm1485, %v1427, 0.0
  %1688 = vadd.xlane.f32.xlu0 %v1687
  %v1689 = vpop.xlane.xlu0 %1688
  %v1690 = vsel %vm1485, %v1428, 0.0
  %1691 = vadd.xlane.f32.xlu0 %v1690
  %v1692 = vpop.xlane.xlu0 %1691
  %v1693 = vsel %vm1485, %v1429, 0.0
  %1694 = vadd.xlane.f32.xlu0 %v1693
  %v1695 = vpop.xlane.xlu0 %1694
  %v1696 = vsel %vm1485, %v1430, 0.0
  %1697 = vadd.xlane.f32.xlu0 %v1696
  %v1698 = vpop.xlane.xlu0 %1697
  %v1699 = vsel %vm1485, %v1431, 0.0
  %1700 = vadd.xlane.f32.xlu0 %v1699
  %v1701 = vpop.xlane.xlu0 %1700
  %v1702 = vsel %vm1485, %v1432, 0.0
  %1703 = vadd.xlane.f32.xlu0 %v1702
  %v1704 = vpop.xlane.xlu0 %1703
  %v1705 = vsel %vm1485, %v1433, 0.0
  %1706 = vadd.xlane.f32.xlu0 %v1705
  %v1707 = vpop.xlane.xlu0 %1706
  %v1708 = vsel %vm1485, %v1434, 0.0
  %1709 = vadd.xlane.f32.xlu0 %v1708
  %v1710 = vpop.xlane.xlu0 %1709
  %v1711 = vsel %vm1485, %v1435, 0.0
  %1712 = vadd.xlane.f32.xlu0 %v1711
  %v1713 = vpop.xlane.xlu0 %1712
  %v1714 = vsel %vm1485, %v1436, 0.0
  %1715 = vadd.xlane.f32.xlu0 %v1714
  %v1716 = vpop.xlane.xlu0 %1715
  %v1717 = vsel %vm1485, %v1437, 0.0
  %1718 = vadd.xlane.f32.xlu0 %v1717
  %v1719 = vpop.xlane.xlu0 %1718
  %v1720 = vsel %vm1485, %v1438, 0.0
  %1721 = vadd.xlane.f32.xlu0 %v1720
  %v1722 = vpop.xlane.xlu0 %1721
  %v1723 = vsel %vm1485, %v1439, 0.0
  %1724 = vadd.xlane.f32.xlu0 %v1723
  %v1725 = vpop.xlane.xlu0 %1724
  %v1726 = vsel %vm1485, %v1440, 0.0
  %1727 = vadd.xlane.f32.xlu0 %v1726
  %v1728 = vpop.xlane.xlu0 %1727
  %v1729 = vsel %vm1485, %v1441, 0.0
  %1730 = vadd.xlane.f32.xlu0 %v1729
  %v1731 = vpop.xlane.xlu0 %1730
  %v1732 = vsel %vm1485, %v1442, 0.0
  %1733 = vadd.xlane.f32.xlu0 %v1732
  %v1734 = vpop.xlane.xlu0 %1733
  %v1735 = vsel %vm1485, %v1443, 0.0
  %1736 = vadd.xlane.f32.xlu0 %v1735
  %v1737 = vpop.xlane.xlu0 %1736
  %v1738 = vsel %vm1485, %v1444, 0.0
  %1739 = vadd.xlane.f32.xlu0 %v1738
  %v1740 = vpop.xlane.xlu0 %1739
  %v1741 = vsel %vm1485, %v1445, 0.0
  %1742 = vadd.xlane.f32.xlu0 %v1741
  %v1743 = vpop.xlane.xlu0 %1742
  %v1744 = vsel %vm1485, %v1446, 0.0
  %1745 = vadd.xlane.f32.xlu0 %v1744
  %v1746 = vpop.xlane.xlu0 %1745
  %v1747 = vsel %vm1485, %v1447, 0.0
  %1748 = vadd.xlane.f32.xlu0 %v1747
  %v1749 = vpop.xlane.xlu0 %1748
  %v1750 = vsel %vm1485, %v1448, 0.0
  %1751 = vadd.xlane.f32.xlu0 %v1750
  %v1752 = vpop.xlane.xlu0 %1751
  %v1753 = vsel %vm1485, %v1449, 0.0
  %1754 = vadd.xlane.f32.xlu0 %v1753
  %v1755 = vpop.xlane.xlu0 %1754
  %v1756 = vsel %vm1485, %v1450, 0.0
  %1757 = vadd.xlane.f32.xlu0 %v1756
  %v1758 = vpop.xlane.xlu0 %1757
  %v1759 = vsel %vm1485, %v1451, 0.0
  %1760 = vadd.xlane.f32.xlu0 %v1759
  %v1761 = vpop.xlane.xlu0 %1760
  %v1762 = vsel %vm1485, %v1452, 0.0
  %1763 = vadd.xlane.f32.xlu0 %v1762
  %v1764 = vpop.xlane.xlu0 %1763
  %v1765 = vsel %vm1485, %v1453, 0.0
  %1766 = vadd.xlane.f32.xlu0 %v1765
  %v1767 = vpop.xlane.xlu0 %1766
  %v1768 = vsel %vm1485, %v1454, 0.0
  %1769 = vadd.xlane.f32.xlu0 %v1768
  %v1770 = vpop.xlane.xlu0 %1769
  %v1771 = vsel %vm1485, %v1455, 0.0
  %1772 = vadd.xlane.f32.xlu0 %v1771
  %v1773 = vpop.xlane.xlu0 %1772
  %v1774 = vsel %vm1485, %v1456, 0.0
  %1775 = vadd.xlane.f32.xlu0 %v1774
  %v1776 = vpop.xlane.xlu0 %1775
  %v1777 = vsel %vm1485, %v1457, 0.0
  %1778 = vadd.xlane.f32.xlu0 %v1777
  %v1779 = vpop.xlane.xlu0 %1778
  %v1780 = vsel %vm1485, %v1458, 0.0
  %1781 = vadd.xlane.f32.xlu0 %v1780
  %v1782 = vpop.xlane.xlu0 %1781
  %v1783 = vsel %vm1485, %v1459, 0.0
  %1784 = vadd.xlane.f32.xlu0 %v1783
  %v1785 = vpop.xlane.xlu0 %1784
  %v1786 = vsel %vm1485, %v1460, 0.0
  %1787 = vadd.xlane.f32.xlu0 %v1786
  %v1788 = vpop.xlane.xlu0 %1787
  %v1789 = vsel %vm1485, %v1461, 0.0
  %1790 = vadd.xlane.f32.xlu0 %v1789
  %v1791 = vpop.xlane.xlu0 %1790
  %v1792 = vsel %vm1485, %v1462, 0.0
  %1793 = vadd.xlane.f32.xlu0 %v1792
  %v1794 = vpop.xlane.xlu0 %1793
  %v1795 = vsel %vm1485, %v1463, 0.0
  %1796 = vadd.xlane.f32.xlu0 %v1795
  %v1797 = vpop.xlane.xlu0 %1796
  %v1798 = vsel %vm1485, %v1464, 0.0
  %1799 = vadd.xlane.f32.xlu0 %v1798
  %v1800 = vpop.xlane.xlu0 %1799
  %v1801 = vsel %vm1485, %v1465, 0.0
  %1802 = vadd.xlane.f32.xlu0 %v1801
  %v1803 = vpop.xlane.xlu0 %1802
  %v1804 = vsel %vm1485, %v1466, 0.0
  %1805 = vadd.xlane.f32.xlu0 %v1804
  %v1806 = vpop.xlane.xlu0 %1805
  %v1807 = vsel %vm1485, %v1467, 0.0
  %1808 = vadd.xlane.f32.xlu0 %v1807
  %v1809 = vpop.xlane.xlu0 %1808
  %v1810 = vsel %vm1485, %v1468, 0.0
  %1811 = vadd.xlane.f32.xlu0 %v1810
  %v1812 = vpop.xlane.xlu0 %1811
  %v1813 = vsel %vm1485, %v1469, 0.0
  %1814 = vadd.xlane.f32.xlu0 %v1813
  %v1815 = vpop.xlane.xlu0 %1814
  %v1816 = vsel %vm1485, %v1470, 0.0
  %1817 = vadd.xlane.f32.xlu0 %v1816
  %v1818 = vpop.xlane.xlu0 %1817
  %v1819 = vsel %vm1485, %v1471, 0.0
  %1820 = vadd.xlane.f32.xlu0 %v1819
  %v1821 = vpop.xlane.xlu0 %1820
  %v1822 = vsel %vm1485, %v1472, 0.0
  %1823 = vadd.xlane.f32.xlu0 %v1822
  %v1824 = vpop.xlane.xlu0 %1823
  %v1825 = vsel %vm1485, %v1473, 0.0
  %1826 = vadd.xlane.f32.xlu0 %v1825
  %v1827 = vpop.xlane.xlu0 %1826
  %v1828 = vsel %vm1485, %v1474, 0.0
  %1829 = vadd.xlane.f32.xlu0 %v1828
  %v1830 = vpop.xlane.xlu0 %1829
  %v1831 = vsel %vm1485, %v1475, 0.0
  %1832 = vadd.xlane.f32.xlu0 %v1831
  %v1833 = vpop.xlane.xlu0 %1832
  %v1834 = vsel %vm1485, %v1476, 0.0
  %1835 = vadd.xlane.f32.xlu0 %v1834
  %v1836 = vpop.xlane.xlu0 %1835
  %v1837 = vsel %vm1485, %v1477, 0.0
  %1838 = vadd.xlane.f32.xlu0 %v1837
  %v1839 = vpop.xlane.xlu0 %1838
  %v1840 = vsel %vm1485, %v1478, 0.0
  %1841 = vadd.xlane.f32.xlu0 %v1840
  %v1842 = vpop.xlane.xlu0 %1841
  %v1843 = vsel %vm1485, %v1479, 0.0
  %1844 = vadd.xlane.f32.xlu0 %v1843
  %v1845 = vpop.xlane.xlu0 %1844
  %v1846 = vsel %vm1485, %v1480, 0.0
  %1847 = vadd.xlane.f32.xlu0 %v1846
  %v1848 = vpop.xlane.xlu0 %1847
  %v1849 = vsel %vm1485, %v1481, 0.0
  %1850 = vadd.xlane.f32.xlu0 %v1849
  %v1851 = vpop.xlane.xlu0 %1850
  %v1852 = vsel %vm1485, %v1482, 0.0
  %1853 = vadd.xlane.f32.xlu0 %v1852
  %v1854 = vpop.xlane.xlu0 %1853
  %v1855 = vsel %vm1485, %v1483, 0.0
  %1856 = vadd.xlane.f32.xlu0 %v1855
  %v1857 = vpop.xlane.xlu0 %1856
  %v1858 = vsel %vm1485, %v1484, 0.0
  %1859 = vadd.xlane.f32.xlu0 %v1858
  %v1860 = vpop.xlane.xlu0 %1859
  %v1861 = vld [vmem:[#allocation2] sm:$0x1]
  %v1863 = vlaneseq
  %v1864 = vshrl.u32 %v1863, 7
  %v1865 = vsub.s32 0, %v1864
  %v1866 = vrot.slane %v1861, %v1865
  %v1868 = vadd.f32 %v1488, %v1866
  %v1869 = vadd.f32 %v1491, %v1866
  %v1870 = vadd.f32 %v1494, %v1866
  %v1871 = vadd.f32 %v1497, %v1866
  %v1872 = vadd.f32 %v1500, %v1866
  %v1873 = vadd.f32 %v1503, %v1866
  %v1874 = vadd.f32 %v1506, %v1866
  %v1875 = vadd.f32 %v1509, %v1866
  %v1876 = vadd.f32 %v1512, %v1866
  %v1877 = vadd.f32 %v1515, %v1866
  %v1878 = vadd.f32 %v1518, %v1866
  %v1879 = vadd.f32 %v1521, %v1866
  %v1880 = vadd.f32 %v1524, %v1866
  %v1881 = vadd.f32 %v1527, %v1866
  %v1882 = vadd.f32 %v1530, %v1866
  %v1883 = vadd.f32 %v1533, %v1866
  %v1884 = vadd.f32 %v1536, %v1866
  %v1885 = vadd.f32 %v1539, %v1866
  %v1886 = vadd.f32 %v1542, %v1866
  %v1887 = vadd.f32 %v1545, %v1866
  %v1888 = vadd.f32 %v1548, %v1866
  %v1889 = vadd.f32 %v1551, %v1866
  %v1890 = vadd.f32 %v1554, %v1866
  %v1891 = vadd.f32 %v1557, %v1866
  %v1892 = vadd.f32 %v1560, %v1866
  %v1893 = vadd.f32 %v1563, %v1866
  %v1894 = vadd.f32 %v1566, %v1866
  %v1895 = vadd.f32 %v1569, %v1866
  %v1896 = vadd.f32 %v1572, %v1866
  %v1897 = vadd.f32 %v1575, %v1866
  %v1898 = vadd.f32 %v1578, %v1866
  %v1899 = vadd.f32 %v1581, %v1866
  %v1900 = vadd.f32 %v1584, %v1866
  %v1901 = vadd.f32 %v1587, %v1866
  %v1902 = vadd.f32 %v1590, %v1866
  %v1903 = vadd.f32 %v1593, %v1866
  %v1904 = vadd.f32 %v1596, %v1866
  %v1905 = vadd.f32 %v1599, %v1866
  %v1906 = vadd.f32 %v1602, %v1866
  %v1907 = vadd.f32 %v1605, %v1866
  %v1908 = vadd.f32 %v1608, %v1866
  %v1909 = vadd.f32 %v1611, %v1866
  %v1910 = vadd.f32 %v1614, %v1866
  %v1911 = vadd.f32 %v1617, %v1866
  %v1912 = vadd.f32 %v1620, %v1866
  %v1913 = vadd.f32 %v1623, %v1866
  %v1914 = vadd.f32 %v1626, %v1866
  %v1915 = vadd.f32 %v1629, %v1866
  %v1916 = vadd.f32 %v1632, %v1866
  %v1917 = vadd.f32 %v1635, %v1866
  %v1918 = vadd.f32 %v1638, %v1866
  %v1919 = vadd.f32 %v1641, %v1866
  %v1920 = vadd.f32 %v1644, %v1866
  %v1921 = vadd.f32 %v1647, %v1866
  %v1922 = vadd.f32 %v1650, %v1866
  %v1923 = vadd.f32 %v1653, %v1866
  %v1924 = vadd.f32 %v1656, %v1866
  %v1925 = vadd.f32 %v1659, %v1866
  %v1926 = vadd.f32 %v1662, %v1866
  %v1927 = vadd.f32 %v1665, %v1866
  %v1928 = vadd.f32 %v1668, %v1866
  %v1929 = vadd.f32 %v1671, %v1866
  %v1930 = vadd.f32 %v1674, %v1866
  %v1931 = vadd.f32 %v1677, %v1866
  %v1932 = vadd.f32 %v1680, %v1866
  %v1933 = vadd.f32 %v1683, %v1866
  %v1934 = vadd.f32 %v1686, %v1866
  %v1935 = vadd.f32 %v1689, %v1866
  %v1936 = vadd.f32 %v1692, %v1866
  %v1937 = vadd.f32 %v1695, %v1866
  %v1938 = vadd.f32 %v1698, %v1866
  %v1939 = vadd.f32 %v1701, %v1866
  %v1940 = vadd.f32 %v1704, %v1866
  %v1941 = vadd.f32 %v1707, %v1866
  %v1942 = vadd.f32 %v1710, %v1866
  %v1943 = vadd.f32 %v1713, %v1866
  %v1944 = vadd.f32 %v1716, %v1866
  %v1945 = vadd.f32 %v1719, %v1866
  %v1946 = vadd.f32 %v1722, %v1866
  %v1947 = vadd.f32 %v1725, %v1866
  %v1948 = vadd.f32 %v1728, %v1866
  %v1949 = vadd.f32 %v1731, %v1866
  %v1950 = vadd.f32 %v1734, %v1866
  %v1951 = vadd.f32 %v1737, %v1866
  %v1952 = vadd.f32 %v1740, %v1866
  %v1953 = vadd.f32 %v1743, %v1866
  %v1954 = vadd.f32 %v1746, %v1866
  %v1955 = vadd.f32 %v1749, %v1866
  %v1956 = vadd.f32 %v1752, %v1866
  %v1957 = vadd.f32 %v1755, %v1866
  %v1958 = vadd.f32 %v1758, %v1866
  %v1959 = vadd.f32 %v1761, %v1866
  %v1960 = vadd.f32 %v1764, %v1866
  %v1961 = vadd.f32 %v1767, %v1866
  %v1962 = vadd.f32 %v1770, %v1866
  %v1963 = vadd.f32 %v1773, %v1866
  %v1964 = vadd.f32 %v1776, %v1866
  %v1965 = vadd.f32 %v1779, %v1866
  %v1966 = vadd.f32 %v1782, %v1866
  %v1967 = vadd.f32 %v1785, %v1866
  %v1968 = vadd.f32 %v1788, %v1866
  %v1969 = vadd.f32 %v1791, %v1866
  %v1970 = vadd.f32 %v1794, %v1866
  %v1971 = vadd.f32 %v1797, %v1866
  %v1972 = vadd.f32 %v1800, %v1866
  %v1973 = vadd.f32 %v1803, %v1866
  %v1974 = vadd.f32 %v1806, %v1866
  %v1975 = vadd.f32 %v1809, %v1866
  %v1976 = vadd.f32 %v1812, %v1866
  %v1977 = vadd.f32 %v1815, %v1866
  %v1978 = vadd.f32 %v1818, %v1866
  %v1979 = vadd.f32 %v1821, %v1866
  %v1980 = vadd.f32 %v1824, %v1866
  %v1981 = vadd.f32 %v1827, %v1866
  %v1982 = vadd.f32 %v1830, %v1866
  %v1983 = vadd.f32 %v1833, %v1866
  %v1984 = vadd.f32 %v1836, %v1866
  %v1985 = vadd.f32 %v1839, %v1866
  %v1986 = vadd.f32 %v1842, %v1866
  %v1987 = vadd.f32 %v1845, %v1866
  %v1988 = vadd.f32 %v1848, %v1866
  %v1989 = vadd.f32 %v1851, %v1866
  %v1990 = vadd.f32 %v1854, %v1866
  %v1991 = vadd.f32 %v1857, %v1866
  %v1992 = vadd.f32 %v1860, %v1866
  %vm1993 = vcmask 7168
  %1994 = vst.msk [vmem:[%s5] sm:$0xff] %vm1993, %v1868
  %1995 = vst.msk [vmem:[%s5 + $0x8] sm:$0xff] %vm1993, %v1869
  %1996 = vst.msk [vmem:[%s5 + $0x10] sm:$0xff] %vm1993, %v1870
  %1997 = vst.msk [vmem:[%s5 + $0x18] sm:$0xff] %vm1993, %v1871
  %1998 = vst.msk [vmem:[%s5 + $0x20] sm:$0xff] %vm1993, %v1872
  %1999 = vst.msk [vmem:[%s5 + $0x28] sm:$0xff] %vm1993, %v1873
  %2000 = vst.msk [vmem:[%s5 + $0x30] sm:$0xff] %vm1993, %v1874
  %2001 = vst.msk [vmem:[%s5 + $0x38] sm:$0xff] %vm1993, %v1875
  %2002 = vst.msk [vmem:[%s5 + $0x40] sm:$0xff] %vm1993, %v1876
  %2003 = vst.msk [vmem:[%s5 + $0x48] sm:$0xff] %vm1993, %v1877
  %2004 = vst.msk [vmem:[%s5 + $0x50] sm:$0xff] %vm1993, %v1878
  %2005 = vst.msk [vmem:[%s5 + $0x58] sm:$0xff] %vm1993, %v1879
  %2006 = vst.msk [vmem:[%s5 + $0x60] sm:$0xff] %vm1993, %v1880
  %2007 = vst.msk [vmem:[%s5 + $0x68] sm:$0xff] %vm1993, %v1881
  %2008 = vst.msk [vmem:[%s5 + $0x70] sm:$0xff] %vm1993, %v1882
  %2009 = vst.msk [vmem:[%s5 + $0x78] sm:$0xff] %vm1993, %v1883
  %2010 = vst.msk [vmem:[%s5 + $0x80] sm:$0xff] %vm1993, %v1884
  %2011 = vst.msk [vmem:[%s5 + $0x88] sm:$0xff] %vm1993, %v1885
  %2012 = vst.msk [vmem:[%s5 + $0x90] sm:$0xff] %vm1993, %v1886
  %2013 = vst.msk [vmem:[%s5 + $0x98] sm:$0xff] %vm1993, %v1887
  %2014 = vst.msk [vmem:[%s5 + $0xa0] sm:$0xff] %vm1993, %v1888
  %2015 = vst.msk [vmem:[%s5 + $0xa8] sm:$0xff] %vm1993, %v1889
  %2016 = vst.msk [vmem:[%s5 + $0xb0] sm:$0xff] %vm1993, %v1890
  %2017 = vst.msk [vmem:[%s5 + $0xb8] sm:$0xff] %vm1993, %v1891
  %2018 = vst.msk [vmem:[%s5 + $0xc0] sm:$0xff] %vm1993, %v1892
  %2019 = vst.msk [vmem:[%s5 + $0xc8] sm:$0xff] %vm1993, %v1893
  %2020 = vst.msk [vmem:[%s5 + $0xd0] sm:$0xff] %vm1993, %v1894
  %2021 = vst.msk [vmem:[%s5 + $0xd8] sm:$0xff] %vm1993, %v1895
  %2022 = vst.msk [vmem:[%s5 + $0xe0] sm:$0xff] %vm1993, %v1896
  %2023 = vst.msk [vmem:[%s5 + $0xe8] sm:$0xff] %vm1993, %v1897
  %2024 = vst.msk [vmem:[%s5 + $0xf0] sm:$0xff] %vm1993, %v1898
  %2025 = vst.msk [vmem:[%s5 + $0xf8] sm:$0xff] %vm1993, %v1899
  %2026 = vst.msk [vmem:[%s5 + $0x100] sm:$0xff] %vm1993, %v1900
  %2027 = vst.msk [vmem:[%s5 + $0x108] sm:$0xff] %vm1993, %v1901
  %2028 = vst.msk [vmem:[%s5 + $0x110] sm:$0xff] %vm1993, %v1902
  %2029 = vst.msk [vmem:[%s5 + $0x118] sm:$0xff] %vm1993, %v1903
  %2030 = vst.msk [vmem:[%s5 + $0x120] sm:$0xff] %vm1993, %v1904
  %2031 = vst.msk [vmem:[%s5 + $0x128] sm:$0xff] %vm1993, %v1905
  %2032 = vst.msk [vmem:[%s5 + $0x130] sm:$0xff] %vm1993, %v1906
  %2033 = vst.msk [vmem:[%s5 + $0x138] sm:$0xff] %vm1993, %v1907
  %2034 = vst.msk [vmem:[%s5 + $0x140] sm:$0xff] %vm1993, %v1908
  %2035 = vst.msk [vmem:[%s5 + $0x148] sm:$0xff] %vm1993, %v1909
  %2036 = vst.msk [vmem:[%s5 + $0x150] sm:$0xff] %vm1993, %v1910
  %2037 = vst.msk [vmem:[%s5 + $0x158] sm:$0xff] %vm1993, %v1911
  %2038 = vst.msk [vmem:[%s5 + $0x160] sm:$0xff] %vm1993, %v1912
  %2039 = vst.msk [vmem:[%s5 + $0x168] sm:$0xff] %vm1993, %v1913
  %2040 = vst.msk [vmem:[%s5 + $0x170] sm:$0xff] %vm1993, %v1914
  %2041 = vst.msk [vmem:[%s5 + $0x178] sm:$0xff] %vm1993, %v1915
  %2042 = vst.msk [vmem:[%s5 + $0x180] sm:$0xff] %vm1993, %v1916
  %2043 = vst.msk [vmem:[%s5 + $0x188] sm:$0xff] %vm1993, %v1917
  %2044 = vst.msk [vmem:[%s5 + $0x190] sm:$0xff] %vm1993, %v1918
  %2045 = vst.msk [vmem:[%s5 + $0x198] sm:$0xff] %vm1993, %v1919
  %2046 = vst.msk [vmem:[%s5 + $0x1a0] sm:$0xff] %vm1993, %v1920
  %2047 = vst.msk [vmem:[%s5 + $0x1a8] sm:$0xff] %vm1993, %v1921
  %2048 = vst.msk [vmem:[%s5 + $0x1b0] sm:$0xff] %vm1993, %v1922
  %2049 = vst.msk [vmem:[%s5 + $0x1b8] sm:$0xff] %vm1993, %v1923
  %2050 = vst.msk [vmem:[%s5 + $0x1c0] sm:$0xff] %vm1993, %v1924
  %2051 = vst.msk [vmem:[%s5 + $0x1c8] sm:$0xff] %vm1993, %v1925
  %2052 = vst.msk [vmem:[%s5 + $0x1d0] sm:$0xff] %vm1993, %v1926
  %2053 = vst.msk [vmem:[%s5 + $0x1d8] sm:$0xff] %vm1993, %v1927
  %2054 = vst.msk [vmem:[%s5 + $0x1e0] sm:$0xff] %vm1993, %v1928
  %2055 = vst.msk [vmem:[%s5 + $0x1e8] sm:$0xff] %vm1993, %v1929
  %2056 = vst.msk [vmem:[%s5 + $0x1f0] sm:$0xff] %vm1993, %v1930
  %2057 = vst.msk [vmem:[%s5 + $0x1f8] sm:$0xff] %vm1993, %v1931
  %2058 = vst.msk [vmem:[%s5 + $0x200] sm:$0xff] %vm1993, %v1932
  %2059 = vst.msk [vmem:[%s5 + $0x208] sm:$0xff] %vm1993, %v1933
  %2060 = vst.msk [vmem:[%s5 + $0x210] sm:$0xff] %vm1993, %v1934
  %2061 = vst.msk [vmem:[%s5 + $0x218] sm:$0xff] %vm1993, %v1935
  %2062 = vst.msk [vmem:[%s5 + $0x220] sm:$0xff] %vm1993, %v1936
  %2063 = vst.msk [vmem:[%s5 + $0x228] sm:$0xff] %vm1993, %v1937
  %2064 = vst.msk [vmem:[%s5 + $0x230] sm:$0xff] %vm1993, %v1938
  %2065 = vst.msk [vmem:[%s5 + $0x238] sm:$0xff] %vm1993, %v1939
  %2066 = vst.msk [vmem:[%s5 + $0x240] sm:$0xff] %vm1993, %v1940
  %2067 = vst.msk [vmem:[%s5 + $0x248] sm:$0xff] %vm1993, %v1941
  %2068 = vst.msk [vmem:[%s5 + $0x250] sm:$0xff] %vm1993, %v1942
  %2069 = vst.msk [vmem:[%s5 + $0x258] sm:$0xff] %vm1993, %v1943
  %2070 = vst.msk [vmem:[%s5 + $0x260] sm:$0xff] %vm1993, %v1944
  %2071 = vst.msk [vmem:[%s5 + $0x268] sm:$0xff] %vm1993, %v1945
  %2072 = vst.msk [vmem:[%s5 + $0x270] sm:$0xff] %vm1993, %v1946
  %2073 = vst.msk [vmem:[%s5 + $0x278] sm:$0xff] %vm1993, %v1947
  %2074 = vst.msk [vmem:[%s5 + $0x280] sm:$0xff] %vm1993, %v1948
  %2075 = vst.msk [vmem:[%s5 + $0x288] sm:$0xff] %vm1993, %v1949
  %2076 = vst.msk [vmem:[%s5 + $0x290] sm:$0xff] %vm1993, %v1950
  %2077 = vst.msk [vmem:[%s5 + $0x298] sm:$0xff] %vm1993, %v1951
  %2078 = vst.msk [vmem:[%s5 + $0x2a0] sm:$0xff] %vm1993, %v1952
  %2079 = vst.msk [vmem:[%s5 + $0x2a8] sm:$0xff] %vm1993, %v1953
  %2080 = vst.msk [vmem:[%s5 + $0x2b0] sm:$0xff] %vm1993, %v1954
  %2081 = vst.msk [vmem:[%s5 + $0x2b8] sm:$0xff] %vm1993, %v1955
  %2082 = vst.msk [vmem:[%s5 + $0x2c0] sm:$0xff] %vm1993, %v1956
  %2083 = vst.msk [vmem:[%s5 + $0x2c8] sm:$0xff] %vm1993, %v1957
  %2084 = vst.msk [vmem:[%s5 + $0x2d0] sm:$0xff] %vm1993, %v1958
  %2085 = vst.msk [vmem:[%s5 + $0x2d8] sm:$0xff] %vm1993, %v1959
  %2086 = vst.msk [vmem:[%s5 + $0x2e0] sm:$0xff] %vm1993, %v1960
  %2087 = vst.msk [vmem:[%s5 + $0x2e8] sm:$0xff] %vm1993, %v1961
  %2088 = vst.msk [vmem:[%s5 + $0x2f0] sm:$0xff] %vm1993, %v1962
  %2089 = vst.msk [vmem:[%s5 + $0x2f8] sm:$0xff] %vm1993, %v1963
  %2090 = vst.msk [vmem:[%s5 + $0x300] sm:$0xff] %vm1993, %v1964
  %2091 = vst.msk [vmem:[%s5 + $0x308] sm:$0xff] %vm1993, %v1965
  %2092 = vst.msk [vmem:[%s5 + $0x310] sm:$0xff] %vm1993, %v1966
  %2093 = vst.msk [vmem:[%s5 + $0x318] sm:$0xff] %vm1993, %v1967
  %2094 = vst.msk [vmem:[%s5 + $0x320] sm:$0xff] %vm1993, %v1968
  %2095 = vst.msk [vmem:[%s5 + $0x328] sm:$0xff] %vm1993, %v1969
  %2096 = vst.msk [vmem:[%s5 + $0x330] sm:$0xff] %vm1993, %v1970
  %2097 = vst.msk [vmem:[%s5 + $0x338] sm:$0xff] %vm1993, %v1971
  %2098 = vst.msk [vmem:[%s5 + $0x340] sm:$0xff] %vm1993, %v1972
  %2099 = vst.msk [vmem:[%s5 + $0x348] sm:$0xff] %vm1993, %v1973
  %2100 = vst.msk [vmem:[%s5 + $0x350] sm:$0xff] %vm1993, %v1974
  %2101 = vst.msk [vmem:[%s5 + $0x358] sm:$0xff] %vm1993, %v1975
  %2102 = vst.msk [vmem:[%s5 + $0x360] sm:$0xff] %vm1993, %v1976
  %2103 = vst.msk [vmem:[%s5 + $0x368] sm:$0xff] %vm1993, %v1977
  %2104 = vst.msk [vmem:[%s5 + $0x370] sm:$0xff] %vm1993, %v1978
  %2105 = vst.msk [vmem:[%s5 + $0x378] sm:$0xff] %vm1993, %v1979
  %2106 = vst.msk [vmem:[%s5 + $0x380] sm:$0xff] %vm1993, %v1980
  %2107 = vst.msk [vmem:[%s5 + $0x388] sm:$0xff] %vm1993, %v1981
  %2108 = vst.msk [vmem:[%s5 + $0x390] sm:$0xff] %vm1993, %v1982
  %2109 = vst.msk [vmem:[%s5 + $0x398] sm:$0xff] %vm1993, %v1983
  %2110 = vst.msk [vmem:[%s5 + $0x3a0] sm:$0xff] %vm1993, %v1984
  %2111 = vst.msk [vmem:[%s5 + $0x3a8] sm:$0xff] %vm1993, %v1985
  %2112 = vst.msk [vmem:[%s5 + $0x3b0] sm:$0xff] %vm1993, %v1986
  %2113 = vst.msk [vmem:[%s5 + $0x3b8] sm:$0xff] %vm1993, %v1987
  %2114 = vst.msk [vmem:[%s5 + $0x3c0] sm:$0xff] %vm1993, %v1988
  %2115 = vst.msk [vmem:[%s5 + $0x3c8] sm:$0xff] %vm1993, %v1989
  %2116 = vst.msk [vmem:[%s5 + $0x3d0] sm:$0xff] %vm1993, %v1990
  %2117 = vst.msk [vmem:[%s5 + $0x3d8] sm:$0xff] %vm1993, %v1991
  %2118 = vst.msk [vmem:[%s5 + $0x3e0] sm:$0xff] %vm1993, %v1992
  // Predicated region
  $region22: #{tpu_custom_call.1} parent=0 // pred_check
    _
  $region23: #{tpu_custom_call.1} parent=0 // pred_check_branch
    %2120 = sbr.rel (0) target = $region25
  $region24: #{tpu_custom_call.1} parent=0 // pred_region
    _
  $region25: #{tpu_custom_call.1} parent=0 // pred_fallthru
    _
  // Predicated region
  $region26: #{tpu_custom_call.1} parent=0 // pred_check
    _
  $region27: #{tpu_custom_call.1} parent=0 // pred_check_branch
    %2122 = sbr.rel (0) target = $region29
  $region28: #{tpu_custom_call.1} parent=0 // pred_region
    _
  $region29: #{tpu_custom_call.1} parent=0 // pred_fallthru
    _

</llo_original>
